<compile_context>
chip_gen: v5e
topology: v5e:2x2
jax: 0.10.0
libtpu: 0.0.40
codegen_flags: <defaults>
</compile_context>

<pallas_src>
import math
from functools import partial

import numpy as np
import jax
import jax.numpy as jnp
from jax.experimental import pallas as pl
from jax.experimental.pallas import tpu as pltpu

# ---- model hyper-parameters (small shapes consistent with the module) -------
H_SP, W_SP = 16, 16                 # spatial dims -> d_model = h*w (forward requires h*w == d_model)
D_MODEL = H_SP * W_SP               # 256
NHEAD = 4
HEAD_DIM = D_MODEL // NHEAD         # 64
DIM_FF = 256
NUM_LAYERS = 2
LN_EPS = 1e-5
BS, C = 2, 8                        # batch, channels (channels act as the sequence)

_KP_ORDER = ("wqkv", "bqkv", "wo", "bo", "g1", "be1",
             "w1", "b1", "w2", "b2", "g2", "be2")


# ---------------------------- Pallas kernel ----------------------------------
def _encoder_kernel(x_ref, wqkv_ref, bqkv_ref, wo_ref, bo_ref,
                    g1_ref, be1_ref, w1_ref, b1_ref, w2_ref, b2_ref,
                    g2_ref, be2_ref, o_ref, *, seq_len):
    """One post-norm encoder layer for one block of batch elements.

    grid = (batch_blocks, num_layers); layer axis is "arbitrary".  The activation
    is carried in the resident output block (o_ref), initialized from x_ref at
    l == 0, so both layers run without the activations leaving VMEM.  Weight refs
    are blocked to a single layer along their leading (stacked-layer) axis, so
    Pallas prefetches the next layer's weights behind the current layer's compute.
    """
    f32, bf16 = jnp.float32, jnp.bfloat16
    rows, d = o_ref.shape                       # rows = bblk * seq_len
    bblk = rows // seq_len

    # Initialize the resident activation from the input on the first layer step.
    @pl.when(pl.program_id(1) == 0)
    def _():
        o_ref[...] = x_ref[...]

    x2d = o_ref[...]                            # (rows, D) f32 activation carry
    x_bf = x2d.astype(bf16)

    wqkv = wqkv_ref[0]                          # (H, D, 3*Dh) bf16 (q-scale folded in)
    bqkv = bqkv_ref[0]                          # (H, 1, 3*Dh) f32  (q-scale folded in)
    wo = wo_ref[0]                              # (H, Dh, D)  bf16
    bo = bo_ref[0]                              # (1, D)      f32

    # ---- fused QKV projection: one batched matmul (N = 3*Dh = 192) ----
    xh = jnp.broadcast_to(x_bf, (NHEAD, rows, d))                  # (H, M, D) bf16
    qkv = jnp.einsum("hmd,hdf->hmf", xh, wqkv,
                     preferred_element_type=f32) + bqkv            # (H, M, 192) f32

    # ---- scaled-dot-product attention, heads batched, per batch element ----
    attn_parts = []
    for b in range(bblk):                       # static, <= batch-block size
        qkv_b = qkv[:, b * seq_len:(b + 1) * seq_len, :]           # (H, S, 192)
        q = qkv_b[:, :, :HEAD_DIM].astype(bf16)                    # 1/sqrt(Dh) pre-folded
        k = qkv_b[:, :, HEAD_DIM:2 * HEAD_DIM].astype(bf16)
        v = qkv_b[:, :, 2 * HEAD_DIM:].astype(bf16)

        s = jnp.einsum("hqe,hke->hqk", q, k,
                       preferred_element_type=f32)                 # (H, S, S)
        s = s - jnp.max(s, axis=-1, keepdims=True)
        p = jnp.exp(s)
        p = p * pl.reciprocal(jnp.sum(p, axis=-1, keepdims=True), approx=True)

        ctx = jnp.einsum("hqk,hke->hqe", p.astype(bf16), v,
                         preferred_element_type=f32)               # (H, S, Dh)
        # Out-projection: head-batched matmul + head-sum (K = 64 partials).
        proj = jnp.einsum("hqe,hed->hqd", ctx.astype(bf16), wo,
                          preferred_element_type=f32)              # (H, S, D)
        attn_parts.append(jnp.sum(proj, axis=0))                   # (S, D)

    attn = attn_parts[0] if bblk == 1 else jnp.concatenate(attn_parts, axis=0)
    attn = attn + bo                                               # (rows, D)

    # ---- residual + LayerNorm 1 (f32) ----
    y = x2d + attn
    mu = jnp.mean(y, axis=-1, keepdims=True)
    var = jnp.mean(jnp.square(y - mu), axis=-1, keepdims=True)
    y = (y - mu) * jax.lax.rsqrt(var + LN_EPS) * g1_ref[0] + be1_ref[0]

    # ---- feed-forward (linear -> relu -> linear), bf16 MXU / f32 accum ----
    h1 = jnp.dot(y.astype(bf16), w1_ref[0], preferred_element_type=f32) + b1_ref[0]
    h1 = jnp.maximum(h1, 0.0)
    ff = jnp.dot(h1.astype(bf16), w2_ref[0], preferred_element_type=f32) + b2_ref[0]

    # ---- residual + LayerNorm 2 (f32) ----
    z = y + ff
    mu = jnp.mean(z, axis=-1, keepdims=True)
    var = jnp.mean(jnp.square(z - mu), axis=-1, keepdims=True)
    z = (z - mu) * jax.lax.rsqrt(var + LN_EPS) * g2_ref[0] + be2_ref[0]

    o_ref[...] = z
    # TODO(synk): dropout (p=0.5) is identity in eval mode; training-time dropout
    # is not implemented in this kernel.


# ------------------------------ wrapper ---------------------------------------
def _single_tensorcore_chip():
    """True for TPU generations with a single TensorCore per chip (v5e / v6e)."""
    try:
        kind = jax.devices()[0].device_kind.lower()
    except Exception:
        return False
    return any(t in kind for t in
               ("v5e", "v5 lite", "v5lite", "v6e", "v6 lite", "v6lite"))


@partial(jax.jit, static_argnames=("bblk",))
def _encoder_forward_impl(src, kparams, bblk):
    bs, c, h, w = src.shape
    assert h * w == D_MODEL, "forward requires h*w == d_model"
    s_len, d = c, h * w
    rows = bs * s_len
    rows_blk = bblk * s_len
    x2d = src.reshape(rows, d).astype(jnp.float32)         # (bs*S, D)

    wargs = [kparams[n] for n in _KP_ORDER]
    num_layers = wargs[0].shape[0]

    def wspec(arr):
        zeros = (0,) * (arr.ndim - 1)
        return pl.BlockSpec((1,) + tuple(arr.shape[1:]),
                            lambda b, l, _z=zeros: (l,) + _z)

    act_spec = pl.BlockSpec((rows_blk, d), lambda b, l: (b, 0))

    # Advisory cost estimate (latency-bound kernel; helps XLA schedule neighbours).
    mm_flops = 2 * bs * num_layers * (
        s_len * d * 3 * d                          # fused QKV
        + 2 * NHEAD * s_len * s_len * HEAD_DIM     # scores + PV
        + s_len * d * d                            # out-projection
        + 2 * s_len * d * DIM_FF)                  # FFN
    n_transc = bs * num_layers * (NHEAD * s_len * s_len + 4 * s_len)
    n_bytes = sum(int(np.prod(a.shape)) * jnp.dtype(a.dtype).itemsize for a in wargs)
    n_bytes += 2 * rows * d * 4

    out = pl.pallas_call(
        partial(_encoder_kernel, seq_len=s_len),
        out_shape=jax.ShapeDtypeStruct((rows, d), jnp.float32),
        grid_spec=pltpu.PrefetchScalarGridSpec(
            num_scalar_prefetch=0,
            grid=(bs // bblk, num_layers),          # (batch blocks, layers)
            in_specs=[act_spec] + [wspec(a) for a in wargs],
            out_specs=act_spec,
        ),
        compiler_params=pltpu.CompilerParams(
            dimension_semantics=("parallel", "arbitrary")),
        cost_estimate=pl.CostEstimate(flops=int(mm_flops),
                                      transcendentals=int(n_transc),
                                      bytes_accessed=int(n_bytes)),
    )(x2d, *wargs)
    return out.reshape(bs, c, h, w)


def encoder_forward(src, kparams):
    """src: (bs, c, h, w) f32 -> (bs, c, h, w) f32."""
    bs = src.shape[0]
    # Grid shaping per generation: fold batch into tokens on single-TC chips
    # (v5e/v6e -> one grid step over batch, M = bs*S dense matmuls); keep the
    # batch axis "parallel" on multi-TC chips (v7x: one batch element per core).
    bblk = bs if _single_tensorcore_chip() else 1
    if bs % bblk != 0:
        bblk = 1
    return _encoder_forward_impl(src, kparams, bblk)


# --------------------------- parameter prep ------------------------------------
def prep_kernel_params(layer_params):
    """One-time wrapper-side layout plumbing:
       * fuse per-head Q/K/V weights into (L, H, D, 3*Dh) (one batched matmul/layer),
       * fold 1/sqrt(head_dim) into the q columns of Wqkv and bq (in f32, pre-cast),
       * stack all layers along a leading axis (layer grid axis -> weight prefetch),
       * cast matmul weights to bf16 (MXU-native); biases / LN params stay f32."""
    bf16 = jnp.bfloat16
    scale = 1.0 / math.sqrt(HEAD_DIM)

    def stack(fn):
        return jnp.stack([fn(p) for p in layer_params], axis=0)

    def head_wqkv(p):                  # (D, 3D) -> (H, D, 3*Dh), q-scale folded (f32)
        w = p["wqkv"].reshape(D_MODEL, 3, NHEAD, HEAD_DIM)
        w = w.transpose(2, 0, 1, 3).reshape(NHEAD, D_MODEL, 3 * HEAD_DIM)
        return w.at[:, :, :HEAD_DIM].multiply(scale)

    def head_bqkv(p):                  # (1, 3D) -> (H, 1, 3*Dh), q-scale folded (f32)
        b = p["bqkv"][0].reshape(3, NHEAD, HEAD_DIM)
        b = b.transpose(1, 0, 2).reshape(NHEAD, 1, 3 * HEAD_DIM)
        return b.at[:, :, :HEAD_DIM].multiply(scale)

    return {
        "wqkv": stack(head_wqkv).astype(bf16),
        "bqkv": stack(head_bqkv),
        "wo": stack(lambda p: p["wo"].reshape(NHEAD, HEAD_DIM, D_MODEL)).astype(bf16),
        "bo": stack(lambda p: p["bo"]),
        "g1": stack(lambda p: p["g1"]),
        "be1": stack(lambda p: p["be1"]),
        "w1": stack(lambda p: p["w1"]).astype(bf16),
        "b1": stack(lambda p: p["b1"]),
        "w2": stack(lambda p: p["w2"]).astype(bf16),
        "b2": stack(lambda p: p["b2"]),
        "g2": stack(lambda p: p["g2"]),
        "be2": stack(lambda p: p["be2"]),
    }


# --------------------------- reference (pure JAX, f32) --------------------------
def encoder_forward_ref(src, layer_params):
    bs, c, h, w = src.shape
    x = src.reshape(bs, c, h * w).astype(jnp.float32)
    for p in layer_params:
        qkv = x @ p["wqkv"] + p["bqkv"][0]
        q, k, v = jnp.split(qkv, 3, axis=-1)

        def split_heads(t):
            return t.reshape(bs, c, NHEAD, HEAD_DIM).transpose(0, 2, 1, 3)

        qh = split_heads(q) * (1.0 / math.sqrt(HEAD_DIM))
        kh = split_heads(k)
        vh = split_heads(v)
        s = jnp.einsum("bhqd,bhkd->bhqk", qh, kh)
        s = s - jnp.max(s, axis=-1, keepdims=True)
        pr = jnp.exp(s)
        pr = pr / jnp.sum(pr, axis=-1, keepdims=True)
        ao = jnp.einsum("bhqk,bhkd->bhqd", pr, vh)
        ao = ao.transpose(0, 2, 1, 3).reshape(bs, c, D_MODEL)
        ao = ao @ p["wo"] + p["bo"][0]
        y = x + ao
        mu = jnp.mean(y, axis=-1, keepdims=True)
        var = jnp.mean((y - mu) ** 2, axis=-1, keepdims=True)
        y = (y - mu) * jax.lax.rsqrt(var + LN_EPS) * p["g1"][0] + p["be1"][0]
        ff = jnp.maximum(y @ p["w1"] + p["b1"][0], 0.0) @ p["w2"] + p["b2"][0]
        z = y + ff
        mu = jnp.mean(z, axis=-1, keepdims=True)
        var = jnp.mean((z - mu) ** 2, axis=-1, keepdims=True)
        x = (z - mu) * jax.lax.rsqrt(var + LN_EPS) * p["g2"][0] + p["be2"][0]
    return x.reshape(bs, c, h, w)


# --------------------------- parameter init ------------------------------------
def init_params(key):
    def xavier(k, fan_in, fan_out, shape):
        a = math.sqrt(6.0 / (fan_in + fan_out))
        return jax.random.uniform(k, shape, jnp.float32, -a, a)

    layers = []
    for _ in range(NUM_LAYERS):
        key, k0, k1, k2, k3, k4, k5 = jax.random.split(key, 7)
        layers.append(dict(
            wqkv=xavier(k0, D_MODEL, 3 * D_MODEL, (D_MODEL, 3 * D_MODEL)),
            bqkv=jnp.zeros((1, 3 * D_MODEL), jnp.float32),
            wo=xavier(k1, D_MODEL, D_MODEL, (D_MODEL, D_MODEL)),
            bo=jnp.zeros((1, D_MODEL), jnp.float32),
            g1=jnp.ones((1, D_MODEL), jnp.float32),
            be1=jnp.zeros((1, D_MODEL), jnp.float32),
            w1=xavier(k2, D_MODEL, DIM_FF, (D_MODEL, DIM_FF)),
            b1=jax.random.uniform(k3, (1, DIM_FF), jnp.float32, -0.01, 0.01),
            w2=xavier(k4, DIM_FF, D_MODEL, (DIM_FF, D_MODEL)),
            b2=jax.random.uniform(k5, (1, D_MODEL), jnp.float32, -0.01, 0.01),
            g2=jnp.ones((1, D_MODEL), jnp.float32),
            be2=jnp.zeros((1, D_MODEL), jnp.float32),
        ))
    return layers


# ------------------------------- main ------------------------------------------
if __name__ == "__main__":
    key = jax.random.PRNGKey(0)
    key, pkey, xkey = jax.random.split(key, 3)
    params = init_params(pkey)
    kparams = prep_kernel_params(params)
    src = jax.random.normal(xkey, (BS, C, H_SP, W_SP), jnp.float32)

    out = jax.block_until_ready(encoder_forward(src, kparams))
    ref = jax.block_until_ready(encoder_forward_ref(src, params))

    assert out.shape == src.shape, f"bad shape {out.shape}"
    assert bool(jnp.all(jnp.isfinite(out))), "non-finite output"
    # bf16 MXU operands with f32 accumulation -> looser tolerance than pure f32.
    np.testing.assert_allclose(np.asarray(out), np.asarray(ref),
                               rtol=2e-2, atol=2e-2)
    print("KERNEL_OK")
</pallas_src>

<mosaic_0001>
module attributes {stable_mosaic.version = 11 : i64} {
  func.func @_encoder_kernel(%arg0: i32, %arg1: i32, %arg2: memref<8x256xf32, #tpu.memory_space<vmem>>, %arg3: memref<1x4x256x192xbf16, #tpu.memory_space<vmem>>, %arg4: memref<1x4x1x192xf32, #tpu.memory_space<vmem>>, %arg5: memref<1x4x64x256xbf16, #tpu.memory_space<vmem>>, %arg6: memref<1x1x256xf32, #tpu.memory_space<vmem>>, %arg7: memref<1x1x256xf32, #tpu.memory_space<vmem>>, %arg8: memref<1x1x256xf32, #tpu.memory_space<vmem>>, %arg9: memref<1x256x256xbf16, #tpu.memory_space<vmem>>, %arg10: memref<1x1x256xf32, #tpu.memory_space<vmem>>, %arg11: memref<1x256x256xbf16, #tpu.memory_space<vmem>>, %arg12: memref<1x1x256xf32, #tpu.memory_space<vmem>>, %arg13: memref<1x1x256xf32, #tpu.memory_space<vmem>>, %arg14: memref<1x1x256xf32, #tpu.memory_space<vmem>>, %arg15: memref<8x256xf32, #tpu.memory_space<vmem>>) attributes {dimension_semantics = [#tpu.dimension_semantics<parallel>, #tpu.dimension_semantics<arbitrary>], iteration_bounds = array<i64: 2, 2>, scalar_prefetch = 0 : i64, scratch_operands = 0 : i64, tpu.core_type = #tpu.core_type<tc>, window_params = [{transform_indices = @transform_0, window_bounds = array<i64: 8, 256>}, {transform_indices = @transform_1, window_bounds = array<i64: 1, 4, 256, 192>}, {transform_indices = @transform_2, window_bounds = array<i64: 1, 4, 1, 192>}, {transform_indices = @transform_3, window_bounds = array<i64: 1, 4, 64, 256>}, {transform_indices = @transform_4, window_bounds = array<i64: 1, 1, 256>}, {transform_indices = @transform_5, window_bounds = array<i64: 1, 1, 256>}, {transform_indices = @transform_6, window_bounds = array<i64: 1, 1, 256>}, {transform_indices = @transform_7, window_bounds = array<i64: 1, 256, 256>}, {transform_indices = @transform_8, window_bounds = array<i64: 1, 1, 256>}, {transform_indices = @transform_9, window_bounds = array<i64: 1, 256, 256>}, {transform_indices = @transform_10, window_bounds = array<i64: 1, 1, 256>}, {transform_indices = @transform_11, window_bounds = array<i64: 1, 1, 256>}, {transform_indices = @transform_12, window_bounds = array<i64: 1, 1, 256>}, {transform_indices = @transform_13, window_bounds = array<i64: 8, 256>}]} {
    %c0_i32 = arith.constant 0 : i32
    %0 = arith.cmpi eq, %arg1, %c0_i32 : i32
    %1 = arith.extui %0 : i1 to i32
    %c0_i32_0 = arith.constant 0 : i32
    %2 = arith.cmpi ne, %1, %c0_i32_0 : i32
    scf.if %2 {
      %c0_62 = arith.constant 0 : index
      %c0_63 = arith.constant 0 : index
      %115 = vector.load %arg2[%c0_62, %c0_63] : memref<8x256xf32, #tpu.memory_space<vmem>>, vector<8x256xf32>
      %c0_64 = arith.constant 0 : index
      %c0_65 = arith.constant 0 : index
      %116 = vector.load %arg15[%c0_64, %c0_65] : memref<8x256xf32, #tpu.memory_space<vmem>>, vector<8x256xf32>
      tpu.vector_store %arg15[%c0_64, %c0_65], %115 {strides = array<i32>} : memref<8x256xf32, #tpu.memory_space<vmem>>, vector<8x256xf32>,
    } else {
    }
    %c0 = arith.constant 0 : index
    %c0_1 = arith.constant 0 : index
    %3 = vector.load %arg15[%c0, %c0_1] : memref<8x256xf32, #tpu.memory_space<vmem>>, vector<8x256xf32>
    %4 = arith.truncf %3 : vector<8x256xf32> to vector<8x256xbf16>
    %c0_2 = arith.constant 0 : index
    %c0_3 = arith.constant 0 : index
    %c0_4 = arith.constant 0 : index
    %c0_5 = arith.constant 0 : index
    %5 = vector.load %arg3[%c0_2, %c0_3, %c0_4, %c0_5] : memref<1x4x256x192xbf16, #tpu.memory_space<vmem>>, vector<1x4x256x192xbf16>
    %6 = vector.shape_cast %5 : vector<1x4x256x192xbf16> to vector<4x256x192xbf16>
    %c0_6 = arith.constant 0 : index
    %c0_7 = arith.constant 0 : index
    %c0_8 = arith.constant 0 : index
    %c0_9 = arith.constant 0 : index
    %7 = vector.load %arg4[%c0_6, %c0_7, %c0_8, %c0_9] : memref<1x4x1x192xf32, #tpu.memory_space<vmem>>, vector<1x4x1x192xf32>
    %8 = vector.shape_cast %7 : vector<1x4x1x192xf32> to vector<4x1x192xf32>
    %c0_10 = arith.constant 0 : index
    %c0_11 = arith.constant 0 : index
    %c0_12 = arith.constant 0 : index
    %c0_13 = arith.constant 0 : index
    %9 = vector.load %arg5[%c0_10, %c0_11, %c0_12, %c0_13] : memref<1x4x64x256xbf16, #tpu.memory_space<vmem>>, vector<1x4x64x256xbf16>
    %10 = vector.shape_cast %9 : vector<1x4x64x256xbf16> to vector<4x64x256xbf16>
    %c0_14 = arith.constant 0 : index
    %c0_15 = arith.constant 0 : index
    %c0_16 = arith.constant 0 : index
    %11 = vector.load %arg6[%c0_14, %c0_15, %c0_16] : memref<1x1x256xf32, #tpu.memory_space<vmem>>, vector<1x1x256xf32>
    %12 = vector.shape_cast %11 : vector<1x1x256xf32> to vector<1x256xf32>
    %13 = vector.shape_cast %4 : vector<8x256xbf16> to vector<1x8x256xbf16>
    %14 = vector.broadcast %13 : vector<1x8x256xbf16> to vector<4x8x256xbf16>
    "tpu.trace_start"() <{level = 10 : i32, message = "hmd,hdf->hmf"}> : () -> ()
    %cst = arith.constant dense<0.000000e+00> : vector<4x8x192xf32>
    %15 = tpu.matmul %14, %6, %cst {dimension_numbers = #tpu.dot_dimension_numbers<[2], [1], [1], [2], [0, 0, 0, 1, 1, 2], [0], [0]>} : vector<4x8x256xbf16>, vector<4x256x192xbf16>, vector<4x8x192xf32> -> vector<4x8x192xf32>
    "tpu.trace_stop"() : () -> ()
    %16 = vector.broadcast %8 : vector<4x1x192xf32> to vector<4x8x192xf32>
    %17 = arith.addf %15, %16 : vector<4x8x192xf32>
    %18 = vector.extract_strided_slice %17 {offsets = [0, 0, 0], sizes = [4, 8, 64], strides = [1, 1, 1]} : vector<4x8x192xf32> to vector<4x8x64xf32>
    %19 = arith.truncf %18 : vector<4x8x64xf32> to vector<4x8x64xbf16>
    %20 = vector.extract_strided_slice %17 {offsets = [0, 0, 64], sizes = [4, 8, 64], strides = [1, 1, 1]} : vector<4x8x192xf32> to vector<4x8x64xf32>
    %21 = arith.truncf %20 : vector<4x8x64xf32> to vector<4x8x64xbf16>
    %22 = vector.extract_strided_slice %17 {offsets = [0, 0, 128], sizes = [4, 8, 64], strides = [1, 1, 1]} : vector<4x8x192xf32> to vector<4x8x64xf32>
    %23 = arith.truncf %22 : vector<4x8x64xf32> to vector<4x8x64xbf16>
    "tpu.trace_start"() <{level = 10 : i32, message = "hqe,hke->hqk"}> : () -> ()
    %cst_17 = arith.constant dense<0.000000e+00> : vector<4x8x8xf32>
    %24 = tpu.matmul %19, %21, %cst_17 {dimension_numbers = #tpu.dot_dimension_numbers<[2], [2], [1], [1], [0, 0, 0, 1, 1, 1], [0], [0]>} : vector<4x8x64xbf16>, vector<4x8x64xbf16>, vector<4x8x8xf32> -> vector<4x8x8xf32>
    "tpu.trace_stop"() : () -> ()
    %cst_18 = arith.constant dense<0xFF800000> : vector<4x8xf32>
    %25 = vector.multi_reduction <maximumf>, %24, %cst_18 [2] : vector<4x8x8xf32> to vector<4x8xf32>
    %26 = vector.shape_cast %25 : vector<4x8xf32> to vector<4x8x1xf32>
    %27 = vector.broadcast %26 : vector<4x8x1xf32> to vector<4x8x8xf32>
    %28 = arith.subf %24, %27 : vector<4x8x8xf32>
    %29 = math.exp %28 : vector<4x8x8xf32>
    %cst_19 = arith.constant dense<0.000000e+00> : vector<4x8xf32>
    %30 = vector.multi_reduction <add>, %29, %cst_19 [2] : vector<4x8x8xf32> to vector<4x8xf32>
    %31 = vector.shape_cast %30 : vector<4x8xf32> to vector<4x8x1xf32>
    %32 = tpu.reciprocal %31 {approx = true} : vector<4x8x1xf32> -> vector<4x8x1xf32>
    %33 = vector.broadcast %32 : vector<4x8x1xf32> to vector<4x8x8xf32>
    %34 = arith.mulf %29, %33 : vector<4x8x8xf32>
    %35 = arith.truncf %34 : vector<4x8x8xf32> to vector<4x8x8xbf16>
    "tpu.trace_start"() <{level = 10 : i32, message = "hqk,hke->hqe"}> : () -> ()
    %cst_20 = arith.constant dense<0.000000e+00> : vector<4x8x64xf32>
    %36 = tpu.matmul %35, %23, %cst_20 {dimension_numbers = #tpu.dot_dimension_numbers<[2], [1], [1], [2], [0, 0, 0, 1, 1, 2], [0], [0]>} : vector<4x8x8xbf16>, vector<4x8x64xbf16>, vector<4x8x64xf32> -> vector<4x8x64xf32>
    "tpu.trace_stop"() : () -> ()
    %37 = arith.truncf %36 : vector<4x8x64xf32> to vector<4x8x64xbf16>
    "tpu.trace_start"() <{level = 10 : i32, message = "hqe,hed->hqd"}> : () -> ()
    %cst_21 = arith.constant dense<0.000000e+00> : vector<4x8x256xf32>
    %38 = tpu.matmul %37, %10, %cst_21 {dimension_numbers = #tpu.dot_dimension_numbers<[2], [1], [1], [2], [0, 0, 0, 1, 1, 2], [0], [0]>} : vector<4x8x64xbf16>, vector<4x64x256xbf16>, vector<4x8x256xf32> -> vector<4x8x256xf32>
    "tpu.trace_stop"() : () -> ()
    %cst_22 = arith.constant dense<0.000000e+00> : vector<8x256xf32>
    %39 = vector.multi_reduction <add>, %38, %cst_22 [0] : vector<4x8x256xf32> to vector<8x256xf32>
    %40 = vector.broadcast %12 : vector<1x256xf32> to vector<8x256xf32>
    %41 = arith.addf %39, %40 : vector<8x256xf32>
    %42 = arith.addf %3, %41 : vector<8x256xf32>
    %cst_23 = arith.constant dense<0.000000e+00> : vector<8xf32>
    %43 = vector.multi_reduction <add>, %42, %cst_23 [1] : vector<8x256xf32> to vector<8xf32>
    %44 = vector.shape_cast %43 : vector<8xf32> to vector<8x1xf32>
    %cst_24 = arith.constant 2.560000e+02 : f32
    %45 = vector.broadcast %cst_24 : f32 to vector<8x1xf32>
    %46 = arith.divf %44, %45 : vector<8x1xf32>
    %47 = vector.broadcast %46 : vector<8x1xf32> to vector<8x256xf32>
    %48 = arith.subf %42, %47 : vector<8x256xf32>
    %49 = arith.mulf %48, %48 : vector<8x256xf32>
    %cst_25 = arith.constant dense<0.000000e+00> : vector<8xf32>
    %50 = vector.multi_reduction <add>, %49, %cst_25 [1] : vector<8x256xf32> to vector<8xf32>
    %51 = vector.shape_cast %50 : vector<8xf32> to vector<8x1xf32>
    %cst_26 = arith.constant 2.560000e+02 : f32
    %52 = vector.broadcast %cst_26 : f32 to vector<8x1xf32>
    %53 = arith.divf %51, %52 : vector<8x1xf32>
    %54 = vector.broadcast %46 : vector<8x1xf32> to vector<8x256xf32>
    %55 = arith.subf %42, %54 : vector<8x256xf32>
    %cst_27 = arith.constant 9.99999974E-6 : f32
    %56 = vector.broadcast %cst_27 : f32 to vector<8x1xf32>
    %57 = arith.addf %53, %56 : vector<8x1xf32>
    %58 = math.rsqrt %57 : vector<8x1xf32>
    %59 = vector.broadcast %58 : vector<8x1xf32> to vector<8x256xf32>
    %60 = arith.mulf %55, %59 : vector<8x256xf32>
    %c0_28 = arith.constant 0 : index
    %c0_29 = arith.constant 0 : index
    %c0_30 = arith.constant 0 : index
    %61 = vector.load %arg7[%c0_28, %c0_29, %c0_30] : memref<1x1x256xf32, #tpu.memory_space<vmem>>, vector<1x1x256xf32>
    %62 = vector.shape_cast %61 : vector<1x1x256xf32> to vector<1x256xf32>
    %63 = vector.broadcast %62 : vector<1x256xf32> to vector<8x256xf32>
    %64 = arith.mulf %60, %63 : vector<8x256xf32>
    %c0_31 = arith.constant 0 : index
    %c0_32 = arith.constant 0 : index
    %c0_33 = arith.constant 0 : index
    %65 = vector.load %arg8[%c0_31, %c0_32, %c0_33] : memref<1x1x256xf32, #tpu.memory_space<vmem>>, vector<1x1x256xf32>
    %66 = vector.shape_cast %65 : vector<1x1x256xf32> to vector<1x256xf32>
    %67 = vector.broadcast %66 : vector<1x256xf32> to vector<8x256xf32>
    %68 = arith.addf %64, %67 : vector<8x256xf32>
    %69 = arith.truncf %68 : vector<8x256xf32> to vector<8x256xbf16>
    %c0_34 = arith.constant 0 : index
    %c0_35 = arith.constant 0 : index
    %c0_36 = arith.constant 0 : index
    %70 = vector.load %arg9[%c0_34, %c0_35, %c0_36] : memref<1x256x256xbf16, #tpu.memory_space<vmem>>, vector<1x256x256xbf16>
    %71 = vector.shape_cast %70 : vector<1x256x256xbf16> to vector<256x256xbf16>
    %cst_37 = arith.constant dense<0.000000e+00> : vector<8x256xf32>
    %72 = tpu.matmul %69, %71, %cst_37 {dimension_numbers = #tpu.dot_dimension_numbers<[1], [0], [0], [1], [0, 0, 1, 1], [], []>} : vector<8x256xbf16>, vector<256x256xbf16>, vector<8x256xf32> -> vector<8x256xf32>
    %c0_38 = arith.constant 0 : index
    %c0_39 = arith.constant 0 : index
    %c0_40 = arith.constant 0 : index
    %73 = vector.load %arg10[%c0_38, %c0_39, %c0_40] : memref<1x1x256xf32, #tpu.memory_space<vmem>>, vector<1x1x256xf32>
    %74 = vector.shape_cast %73 : vector<1x1x256xf32> to vector<1x256xf32>
    %75 = vector.broadcast %74 : vector<1x256xf32> to vector<8x256xf32>
    %76 = arith.addf %72, %75 : vector<8x256xf32>
    %cst_41 = arith.constant 0.000000e+00 : f32
    %77 = vector.broadcast %cst_41 : f32 to vector<8x256xf32>
    %78 = arith.maximumf %76, %77 : vector<8x256xf32>
    %79 = arith.truncf %78 : vector<8x256xf32> to vector<8x256xbf16>
    %c0_42 = arith.constant 0 : index
    %c0_43 = arith.constant 0 : index
    %c0_44 = arith.constant 0 : index
    %80 = vector.load %arg11[%c0_42, %c0_43, %c0_44] : memref<1x256x256xbf16, #tpu.memory_space<vmem>>, vector<1x256x256xbf16>
    %81 = vector.shape_cast %80 : vector<1x256x256xbf16> to vector<256x256xbf16>
    %cst_45 = arith.constant dense<0.000000e+00> : vector<8x256xf32>
    %82 = tpu.matmul %79, %81, %cst_45 {dimension_numbers = #tpu.dot_dimension_numbers<[1], [0], [0], [1], [0, 0, 1, 1], [], []>} : vector<8x256xbf16>, vector<256x256xbf16>, vector<8x256xf32> -> vector<8x256xf32>
    %c0_46 = arith.constant 0 : index
    %c0_47 = arith.constant 0 : index
    %c0_48 = arith.constant 0 : index
    %83 = vector.load %arg12[%c0_46, %c0_47, %c0_48] : memref<1x1x256xf32, #tpu.memory_space<vmem>>, vector<1x1x256xf32>
    %84 = vector.shape_cast %83 : vector<1x1x256xf32> to vector<1x256xf32>
    %85 = vector.broadcast %84 : vector<1x256xf32> to vector<8x256xf32>
    %86 = arith.addf %82, %85 : vector<8x256xf32>
    %87 = arith.addf %68, %86 : vector<8x256xf32>
    %cst_49 = arith.constant dense<0.000000e+00> : vector<8xf32>
    %88 = vector.multi_reduction <add>, %87, %cst_49 [1] : vector<8x256xf32> to vector<8xf32>
    %89 = vector.shape_cast %88 : vector<8xf32> to vector<8x1xf32>
    %cst_50 = arith.constant 2.560000e+02 : f32
    %90 = vector.broadcast %cst_50 : f32 to vector<8x1xf32>
    %91 = arith.divf %89, %90 : vector<8x1xf32>
    %92 = vector.broadcast %91 : vector<8x1xf32> to vector<8x256xf32>
    %93 = arith.subf %87, %92 : vector<8x256xf32>
    %94 = arith.mulf %93, %93 : vector<8x256xf32>
    %cst_51 = arith.constant dense<0.000000e+00> : vector<8xf32>
    %95 = vector.multi_reduction <add>, %94, %cst_51 [1] : vector<8x256xf32> to vector<8xf32>
    %96 = vector.shape_cast %95 : vector<8xf32> to vector<8x1xf32>
    %cst_52 = arith.constant 2.560000e+02 : f32
    %97 = vector.broadcast %cst_52 : f32 to vector<8x1xf32>
    %98 = arith.divf %96, %97 : vector<8x1xf32>
    %99 = vector.broadcast %91 : vector<8x1xf32> to vector<8x256xf32>
    %100 = arith.subf %87, %99 : vector<8x256xf32>
    %cst_53 = arith.constant 9.99999974E-6 : f32
    %101 = vector.broadcast %cst_53 : f32 to vector<8x1xf32>
    %102 = arith.addf %98, %101 : vector<8x1xf32>
    %103 = math.rsqrt %102 : vector<8x1xf32>
    %104 = vector.broadcast %103 : vector<8x1xf32> to vector<8x256xf32>
    %105 = arith.mulf %100, %104 : vector<8x256xf32>
    %c0_54 = arith.constant 0 : index
    %c0_55 = arith.constant 0 : index
    %c0_56 = arith.constant 0 : index
    %106 = vector.load %arg13[%c0_54, %c0_55, %c0_56] : memref<1x1x256xf32, #tpu.memory_space<vmem>>, vector<1x1x256xf32>
    %107 = vector.shape_cast %106 : vector<1x1x256xf32> to vector<1x256xf32>
    %108 = vector.broadcast %107 : vector<1x256xf32> to vector<8x256xf32>
    %109 = arith.mulf %105, %108 : vector<8x256xf32>
    %c0_57 = arith.constant 0 : index
    %c0_58 = arith.constant 0 : index
    %c0_59 = arith.constant 0 : index
    %110 = vector.load %arg14[%c0_57, %c0_58, %c0_59] : memref<1x1x256xf32, #tpu.memory_space<vmem>>, vector<1x1x256xf32>
    %111 = vector.shape_cast %110 : vector<1x1x256xf32> to vector<1x256xf32>
    %112 = vector.broadcast %111 : vector<1x256xf32> to vector<8x256xf32>
    %113 = arith.addf %109, %112 : vector<8x256xf32>
    %c0_60 = arith.constant 0 : index
    %c0_61 = arith.constant 0 : index
    %114 = vector.load %arg15[%c0_60, %c0_61] : memref<8x256xf32, #tpu.memory_space<vmem>>, vector<8x256xf32>
    tpu.vector_store %arg15[%c0_60, %c0_61], %113 {strides = array<i32>} : memref<8x256xf32, #tpu.memory_space<vmem>>, vector<8x256xf32>,
    return
  }
  func.func @transform_0(%arg0: i32, %arg1: i32) -> (i32, i32) {
    %c0_i32 = arith.constant 0 : i32
    %c0_i32_0 = arith.constant 0 : i32
    return %arg0, %c0_i32 : i32, i32
  }
  func.func @transform_1(%arg0: i32, %arg1: i32) -> (i32, i32, i32, i32) {
    %c0_i32 = arith.constant 0 : i32
    %c0_i32_0 = arith.constant 0 : i32
    %c0_i32_1 = arith.constant 0 : i32
    %c0_i32_2 = arith.constant 0 : i32
    return %arg1, %c0_i32, %c0_i32_0, %c0_i32_1 : i32, i32, i32, i32
  }
  func.func @transform_2(%arg0: i32, %arg1: i32) -> (i32, i32, i32, i32) {
    %c0_i32 = arith.constant 0 : i32
    %c0_i32_0 = arith.constant 0 : i32
    %c0_i32_1 = arith.constant 0 : i32
    %c0_i32_2 = arith.constant 0 : i32
    return %arg1, %c0_i32, %c0_i32_0, %c0_i32_1 : i32, i32, i32, i32
  }
  func.func @transform_3(%arg0: i32, %arg1: i32) -> (i32, i32, i32, i32) {
    %c0_i32 = arith.constant 0 : i32
    %c0_i32_0 = arith.constant 0 : i32
    %c0_i32_1 = arith.constant 0 : i32
    %c0_i32_2 = arith.constant 0 : i32
    return %arg1, %c0_i32, %c0_i32_0, %c0_i32_1 : i32, i32, i32, i32
  }
  func.func @transform_4(%arg0: i32, %arg1: i32) -> (i32, i32, i32) {
    %c0_i32 = arith.constant 0 : i32
    %c0_i32_0 = arith.constant 0 : i32
    %c0_i32_1 = arith.constant 0 : i32
    return %arg1, %c0_i32, %c0_i32_0 : i32, i32, i32
  }
  func.func @transform_5(%arg0: i32, %arg1: i32) -> (i32, i32, i32) {
    %c0_i32 = arith.constant 0 : i32
    %c0_i32_0 = arith.constant 0 : i32
    %c0_i32_1 = arith.constant 0 : i32
    return %arg1, %c0_i32, %c0_i32_0 : i32, i32, i32
  }
  func.func @transform_6(%arg0: i32, %arg1: i32) -> (i32, i32, i32) {
    %c0_i32 = arith.constant 0 : i32
    %c0_i32_0 = arith.constant 0 : i32
    %c0_i32_1 = arith.constant 0 : i32
    return %arg1, %c0_i32, %c0_i32_0 : i32, i32, i32
  }
  func.func @transform_7(%arg0: i32, %arg1: i32) -> (i32, i32, i32) {
    %c0_i32 = arith.constant 0 : i32
    %c0_i32_0 = arith.constant 0 : i32
    %c0_i32_1 = arith.constant 0 : i32
    return %arg1, %c0_i32, %c0_i32_0 : i32, i32, i32
  }
  func.func @transform_8(%arg0: i32, %arg1: i32) -> (i32, i32, i32) {
    %c0_i32 = arith.constant 0 : i32
    %c0_i32_0 = arith.constant 0 : i32
    %c0_i32_1 = arith.constant 0 : i32
    return %arg1, %c0_i32, %c0_i32_0 : i32, i32, i32
  }
  func.func @transform_9(%arg0: i32, %arg1: i32) -> (i32, i32, i32) {
    %c0_i32 = arith.constant 0 : i32
    %c0_i32_0 = arith.constant 0 : i32
    %c0_i32_1 = arith.constant 0 : i32
    return %arg1, %c0_i32, %c0_i32_0 : i32, i32, i32
  }
  func.func @transform_10(%arg0: i32, %arg1: i32) -> (i32, i32, i32) {
    %c0_i32 = arith.constant 0 : i32
    %c0_i32_0 = arith.constant 0 : i32
    %c0_i32_1 = arith.constant 0 : i32
    return %arg1, %c0_i32, %c0_i32_0 : i32, i32, i32
  }
  func.func @transform_11(%arg0: i32, %arg1: i32) -> (i32, i32, i32) {
    %c0_i32 = arith.constant 0 : i32
    %c0_i32_0 = arith.constant 0 : i32
    %c0_i32_1 = arith.constant 0 : i32
    return %arg1, %c0_i32, %c0_i32_0 : i32, i32, i32
  }
  func.func @transform_12(%arg0: i32, %arg1: i32) -> (i32, i32, i32) {
    %c0_i32 = arith.constant 0 : i32
    %c0_i32_0 = arith.constant 0 : i32
    %c0_i32_1 = arith.constant 0 : i32
    return %arg1, %c0_i32, %c0_i32_0 : i32, i32, i32
  }
  func.func @transform_13(%arg0: i32, %arg1: i32) -> (i32, i32) {
    %c0_i32 = arith.constant 0 : i32
    %c0_i32_0 = arith.constant 0 : i32
    return %arg0, %c0_i32 : i32, i32
  }
}

</mosaic_0001>

<llo_original>
// kernel: _encoder_forward_impl.1
$region0: #{_encoder_forward_impl.1}
  #allocation0 [shape = 'u32[]', space=smem, size = 0x4, offset = 0x4, fixed_abs, tag = 'smem constant byte address 0x4 - core index']
  #allocation1 [shape = 'u32[72,128]{1,0:T(1,128)}', space=vmem, size = 0x9000, scoped, tag = 'internal scratch']
  %s0 = inlined_call_operand.vmem [shape: f32[16,256], index: 0, kind: input, shape index: {}]
  %s1 = inlined_call_operand.vmem [shape: bf16[2,4,256,192], index: 1, kind: input, shape index: {}]
  %s2 = inlined_call_operand.vmem [shape: f32[2,4,1,192], index: 2, kind: input, shape index: {}]
  %s3 = inlined_call_operand.vmem [shape: bf16[2,4,64,256], index: 3, kind: input, shape index: {}]
  %s4 = inlined_call_operand.vmem [shape: f32[2,1,256], index: 4, kind: input, shape index: {}]
  %s5 = inlined_call_operand.vmem [shape: f32[2,1,256], index: 5, kind: input, shape index: {}]
  %s6 = inlined_call_operand.vmem [shape: f32[2,1,256], index: 6, kind: input, shape index: {}]
  %s7 = inlined_call_operand.vmem [shape: bf16[2,256,256], index: 7, kind: input, shape index: {}]
  %s8 = inlined_call_operand.vmem [shape: f32[2,1,256], index: 8, kind: input, shape index: {}]
  %s9 = inlined_call_operand.vmem [shape: bf16[2,256,256], index: 9, kind: input, shape index: {}]
  %s10 = inlined_call_operand.vmem [shape: f32[2,1,256], index: 10, kind: input, shape index: {}]
  %s11 = inlined_call_operand.vmem [shape: f32[2,1,256], index: 11, kind: input, shape index: {}]
  %s12 = inlined_call_operand.vmem [shape: f32[2,1,256], index: 12, kind: input, shape index: {}]
  %s13 = inlined_call_operand.vmem [shape: f32[16,256], index: 13, kind: output, shape index: {}]
  %s14 = sld [smem:[#allocation0]]
  $region89: #{_encoder_forward_impl.1} parent=0
    _
  %s16 = ssub.s32 1, %s14
  %s17 = scalar_select 0, %s16, %s14
  loop: start=0, step=1, limit=6
  $region2: #{_encoder_forward_impl.1} parent=0 // loop_pre_header
    _
  $region3: #{_encoder_forward_impl.1} parent=0 // loop_header
    %s19 = sphi 0, %s23
    %p20 = scmp.ge.s32.totalorder %s19, 6
    %s26 = sphi 0, %s38
    %s27 = sphi 0, %s34
    %s28 = sphi 0, %s26
    %s29 = sphi 0, %s27
    %s30 = sphi 0, %s28
    %s31 = sphi 0, %s29
    %s41 = sphi 0, %s43
    %s44 = sphi 0, %s41
    %s45 = sphi 0, %s44
    %s61 = sphi 0, %s45
    %s67 = sphi 0, %s69
    %s70 = sphi 0, %s67
    %s71 = sphi 0, %s70
    %s87 = sphi 0, %s71
    %s93 = sphi 0, %s95
    %s96 = sphi 0, %s93
    %s97 = sphi 0, %s96
    %s113 = sphi 0, %s97
    %s119 = sphi 0, %s121
    %s122 = sphi 0, %s119
    %s123 = sphi 0, %s122
    %s139 = sphi 0, %s123
    %s145 = sphi 0, %s147
    %s148 = sphi 0, %s145
    %s149 = sphi 0, %s148
    %s165 = sphi 0, %s149
    %s171 = sphi 0, %s173
    %s174 = sphi 0, %s171
    %s175 = sphi 0, %s174
    %s191 = sphi 0, %s175
    %s197 = sphi 0, %s199
    %s200 = sphi 0, %s197
    %s201 = sphi 0, %s200
    %s217 = sphi 0, %s201
    %s223 = sphi 0, %s225
    %s226 = sphi 0, %s223
    %s227 = sphi 0, %s226
    %s243 = sphi 0, %s227
    %s249 = sphi 0, %s251
    %s252 = sphi 0, %s249
    %s253 = sphi 0, %s252
    %s269 = sphi 0, %s253
    %s275 = sphi 0, %s277
    %s278 = sphi 0, %s275
    %s279 = sphi 0, %s278
    %s295 = sphi 0, %s279
    %s301 = sphi 0, %s303
    %s304 = sphi 0, %s301
    %s305 = sphi 0, %s304
    %s321 = sphi 0, %s305
    %s327 = sphi 0, %s329
    %s330 = sphi 0, %s327
    %s331 = sphi 0, %s330
    %s347 = sphi 0, %s331
    %s353 = sphi 0, %s355
    %s356 = sphi 0, %s353
    %s357 = sphi 0, %s356
    %s373 = sphi 0, %s357
    %s379 = sphi 0, %s381
    %s382 = sphi 0, %s379
    %s383 = sphi 0, %s382
    %s399 = sphi 0, %s383
  $region4: #{_encoder_forward_impl.1} parent=0 // loop_header_branch
    %22 = sbr.rel (%p20) target = $region8
  $region5: #{_encoder_forward_impl.1} parent=0 // loop_body
    %s24 = ssub.s32 %s19, 1
    %s25 = ssub.s32 %s19, 2
    %s32 = sadd.s32 1, %s27
    %p33 = scmp.ge.s32.totalorder %s32, 2
    %s34 = scalar_select %p33, 0, %s32
    %s35 = sadd.s32 1, %s26
    %s36 = scalar_select %p33, %s35, %s26
    %p37 = scmp.ge.s32.totalorder %s36, 2
    %s38 = scalar_select %p37, 0, %s36
    %s39 = ssub.s32 %s26, %s38
    %p40 = scmp.eq.s32.totalorder %s39, 0
    %s42 = sadd.s32 %s41, 1
    %s43 = scalar_select %p40, %s41, %s42
    %p46 = pneg %p40
    %p47 = scmp.eq.s32.totalorder %s19, 3
    %p48 = por %p46, %p47
    %p49 = scmp.ne.s32.totalorder %s41, %s44
    %p50 = scmp.eq.s32.totalorder %s19, 0
    %p51 = por %p49, %p50
    %p52 = scmp.ne.s32.totalorder %s41, %s44
    %p53 = scmp.eq.s32.totalorder %s24, 3
    %p54 = por %p52, %p53
    %p55 = scmp.ne.s32.totalorder %s44, %s45
    %p56 = scmp.eq.s32.totalorder %s24, 0
    %p57 = por %p55, %p56
    %p58 = scmp.ne.s32.totalorder %s44, %s45
    %p59 = scmp.eq.s32.totalorder %s25, 3
    %p60 = por %p58, %p59
    %p62 = scmp.ne.s32.totalorder %s45, %s61
    %p63 = scmp.eq.s32.totalorder %s25, 0
    %p64 = por %p62, %p63
    %s65 = ssub.s32 %s27, %s34
    %p66 = scmp.eq.s32.totalorder %s65, 0
    %s68 = sadd.s32 %s67, 1
    %s69 = scalar_select %p66, %s67, %s68
    %p72 = pneg %p66
    %p73 = scmp.eq.s32.totalorder %s19, 3
    %p74 = por %p72, %p73
    %p75 = scmp.ne.s32.totalorder %s67, %s70
    %p76 = scmp.eq.s32.totalorder %s19, 0
    %p77 = por %p75, %p76
    %p78 = scmp.ne.s32.totalorder %s67, %s70
    %p79 = scmp.eq.s32.totalorder %s24, 3
    %p80 = por %p78, %p79
    %p81 = scmp.ne.s32.totalorder %s70, %s71
    %p82 = scmp.eq.s32.totalorder %s24, 0
    %p83 = por %p81, %p82
    %p84 = scmp.ne.s32.totalorder %s70, %s71
    %p85 = scmp.eq.s32.totalorder %s25, 3
    %p86 = por %p84, %p85
    %p88 = scmp.ne.s32.totalorder %s71, %s87
    %p89 = scmp.eq.s32.totalorder %s25, 0
    %p90 = por %p88, %p89
    %s91 = ssub.s32 %s27, %s34
    %p92 = scmp.eq.s32.totalorder %s91, 0
    %s94 = sadd.s32 %s93, 1
    %s95 = scalar_select %p92, %s93, %s94
    %p98 = pneg %p92
    %p99 = scmp.eq.s32.totalorder %s19, 3
    %p100 = por %p98, %p99
    %p101 = scmp.ne.s32.totalorder %s93, %s96
    %p102 = scmp.eq.s32.totalorder %s19, 0
    %p103 = por %p101, %p102
    %p104 = scmp.ne.s32.totalorder %s93, %s96
    %p105 = scmp.eq.s32.totalorder %s24, 3
    %p106 = por %p104, %p105
    %p107 = scmp.ne.s32.totalorder %s96, %s97
    %p108 = scmp.eq.s32.totalorder %s24, 0
    %p109 = por %p107, %p108
    %p110 = scmp.ne.s32.totalorder %s96, %s97
    %p111 = scmp.eq.s32.totalorder %s25, 3
    %p112 = por %p110, %p111
    %p114 = scmp.ne.s32.totalorder %s97, %s113
    %p115 = scmp.eq.s32.totalorder %s25, 0
    %p116 = por %p114, %p115
    %s117 = ssub.s32 %s27, %s34
    %p118 = scmp.eq.s32.totalorder %s117, 0
    %s120 = sadd.s32 %s119, 1
    %s121 = scalar_select %p118, %s119, %s120
    %p124 = pneg %p118
    %p125 = scmp.eq.s32.totalorder %s19, 3
    %p126 = por %p124, %p125
    %p127 = scmp.ne.s32.totalorder %s119, %s122
    %p128 = scmp.eq.s32.totalorder %s19, 0
    %p129 = por %p127, %p128
    %p130 = scmp.ne.s32.totalorder %s119, %s122
    %p131 = scmp.eq.s32.totalorder %s24, 3
    %p132 = por %p130, %p131
    %p133 = scmp.ne.s32.totalorder %s122, %s123
    %p134 = scmp.eq.s32.totalorder %s24, 0
    %p135 = por %p133, %p134
    %p136 = scmp.ne.s32.totalorder %s122, %s123
    %p137 = scmp.eq.s32.totalorder %s25, 3
    %p138 = por %p136, %p137
    %p140 = scmp.ne.s32.totalorder %s123, %s139
    %p141 = scmp.eq.s32.totalorder %s25, 0
    %p142 = por %p140, %p141
    %s143 = ssub.s32 %s27, %s34
    %p144 = scmp.eq.s32.totalorder %s143, 0
    %s146 = sadd.s32 %s145, 1
    %s147 = scalar_select %p144, %s145, %s146
    %p150 = pneg %p144
    %p151 = scmp.eq.s32.totalorder %s19, 3
    %p152 = por %p150, %p151
    %p153 = scmp.ne.s32.totalorder %s145, %s148
    %p154 = scmp.eq.s32.totalorder %s19, 0
    %p155 = por %p153, %p154
    %p156 = scmp.ne.s32.totalorder %s145, %s148
    %p157 = scmp.eq.s32.totalorder %s24, 3
    %p158 = por %p156, %p157
    %p159 = scmp.ne.s32.totalorder %s148, %s149
    %p160 = scmp.eq.s32.totalorder %s24, 0
    %p161 = por %p159, %p160
    %p162 = scmp.ne.s32.totalorder %s148, %s149
    %p163 = scmp.eq.s32.totalorder %s25, 3
    %p164 = por %p162, %p163
    %p166 = scmp.ne.s32.totalorder %s149, %s165
    %p167 = scmp.eq.s32.totalorder %s25, 0
    %p168 = por %p166, %p167
    %s169 = ssub.s32 %s27, %s34
    %p170 = scmp.eq.s32.totalorder %s169, 0
    %s172 = sadd.s32 %s171, 1
    %s173 = scalar_select %p170, %s171, %s172
    %p176 = pneg %p170
    %p177 = scmp.eq.s32.totalorder %s19, 3
    %p178 = por %p176, %p177
    %p179 = scmp.ne.s32.totalorder %s171, %s174
    %p180 = scmp.eq.s32.totalorder %s19, 0
    %p181 = por %p179, %p180
    %p182 = scmp.ne.s32.totalorder %s171, %s174
    %p183 = scmp.eq.s32.totalorder %s24, 3
    %p184 = por %p182, %p183
    %p185 = scmp.ne.s32.totalorder %s174, %s175
    %p186 = scmp.eq.s32.totalorder %s24, 0
    %p187 = por %p185, %p186
    %p188 = scmp.ne.s32.totalorder %s174, %s175
    %p189 = scmp.eq.s32.totalorder %s25, 3
    %p190 = por %p188, %p189
    %p192 = scmp.ne.s32.totalorder %s175, %s191
    %p193 = scmp.eq.s32.totalorder %s25, 0
    %p194 = por %p192, %p193
    %s195 = ssub.s32 %s27, %s34
    %p196 = scmp.eq.s32.totalorder %s195, 0
    %s198 = sadd.s32 %s197, 1
    %s199 = scalar_select %p196, %s197, %s198
    %p202 = pneg %p196
    %p203 = scmp.eq.s32.totalorder %s19, 3
    %p204 = por %p202, %p203
    %p205 = scmp.ne.s32.totalorder %s197, %s200
    %p206 = scmp.eq.s32.totalorder %s19, 0
    %p207 = por %p205, %p206
    %p208 = scmp.ne.s32.totalorder %s197, %s200
    %p209 = scmp.eq.s32.totalorder %s24, 3
    %p210 = por %p208, %p209
    %p211 = scmp.ne.s32.totalorder %s200, %s201
    %p212 = scmp.eq.s32.totalorder %s24, 0
    %p213 = por %p211, %p212
    %p214 = scmp.ne.s32.totalorder %s200, %s201
    %p215 = scmp.eq.s32.totalorder %s25, 3
    %p216 = por %p214, %p215
    %p218 = scmp.ne.s32.totalorder %s201, %s217
    %p219 = scmp.eq.s32.totalorder %s25, 0
    %p220 = por %p218, %p219
    %s221 = ssub.s32 %s27, %s34
    %p222 = scmp.eq.s32.totalorder %s221, 0
    %s224 = sadd.s32 %s223, 1
    %s225 = scalar_select %p222, %s223, %s224
    %p228 = pneg %p222
    %p229 = scmp.eq.s32.totalorder %s19, 3
    %p230 = por %p228, %p229
    %p231 = scmp.ne.s32.totalorder %s223, %s226
    %p232 = scmp.eq.s32.totalorder %s19, 0
    %p233 = por %p231, %p232
    %p234 = scmp.ne.s32.totalorder %s223, %s226
    %p235 = scmp.eq.s32.totalorder %s24, 3
    %p236 = por %p234, %p235
    %p237 = scmp.ne.s32.totalorder %s226, %s227
    %p238 = scmp.eq.s32.totalorder %s24, 0
    %p239 = por %p237, %p238
    %p240 = scmp.ne.s32.totalorder %s226, %s227
    %p241 = scmp.eq.s32.totalorder %s25, 3
    %p242 = por %p240, %p241
    %p244 = scmp.ne.s32.totalorder %s227, %s243
    %p245 = scmp.eq.s32.totalorder %s25, 0
    %p246 = por %p244, %p245
    %s247 = ssub.s32 %s27, %s34
    %p248 = scmp.eq.s32.totalorder %s247, 0
    %s250 = sadd.s32 %s249, 1
    %s251 = scalar_select %p248, %s249, %s250
    %p254 = pneg %p248
    %p255 = scmp.eq.s32.totalorder %s19, 3
    %p256 = por %p254, %p255
    %p257 = scmp.ne.s32.totalorder %s249, %s252
    %p258 = scmp.eq.s32.totalorder %s19, 0
    %p259 = por %p257, %p258
    %p260 = scmp.ne.s32.totalorder %s249, %s252
    %p261 = scmp.eq.s32.totalorder %s24, 3
    %p262 = por %p260, %p261
    %p263 = scmp.ne.s32.totalorder %s252, %s253
    %p264 = scmp.eq.s32.totalorder %s24, 0
    %p265 = por %p263, %p264
    %p266 = scmp.ne.s32.totalorder %s252, %s253
    %p267 = scmp.eq.s32.totalorder %s25, 3
    %p268 = por %p266, %p267
    %p270 = scmp.ne.s32.totalorder %s253, %s269
    %p271 = scmp.eq.s32.totalorder %s25, 0
    %p272 = por %p270, %p271
    %s273 = ssub.s32 %s27, %s34
    %p274 = scmp.eq.s32.totalorder %s273, 0
    %s276 = sadd.s32 %s275, 1
    %s277 = scalar_select %p274, %s275, %s276
    %p280 = pneg %p274
    %p281 = scmp.eq.s32.totalorder %s19, 3
    %p282 = por %p280, %p281
    %p283 = scmp.ne.s32.totalorder %s275, %s278
    %p284 = scmp.eq.s32.totalorder %s19, 0
    %p285 = por %p283, %p284
    %p286 = scmp.ne.s32.totalorder %s275, %s278
    %p287 = scmp.eq.s32.totalorder %s24, 3
    %p288 = por %p286, %p287
    %p289 = scmp.ne.s32.totalorder %s278, %s279
    %p290 = scmp.eq.s32.totalorder %s24, 0
    %p291 = por %p289, %p290
    %p292 = scmp.ne.s32.totalorder %s278, %s279
    %p293 = scmp.eq.s32.totalorder %s25, 3
    %p294 = por %p292, %p293
    %p296 = scmp.ne.s32.totalorder %s279, %s295
    %p297 = scmp.eq.s32.totalorder %s25, 0
    %p298 = por %p296, %p297
    %s299 = ssub.s32 %s27, %s34
    %p300 = scmp.eq.s32.totalorder %s299, 0
    %s302 = sadd.s32 %s301, 1
    %s303 = scalar_select %p300, %s301, %s302
    %p306 = pneg %p300
    %p307 = scmp.eq.s32.totalorder %s19, 3
    %p308 = por %p306, %p307
    %p309 = scmp.ne.s32.totalorder %s301, %s304
    %p310 = scmp.eq.s32.totalorder %s19, 0
    %p311 = por %p309, %p310
    %p312 = scmp.ne.s32.totalorder %s301, %s304
    %p313 = scmp.eq.s32.totalorder %s24, 3
    %p314 = por %p312, %p313
    %p315 = scmp.ne.s32.totalorder %s304, %s305
    %p316 = scmp.eq.s32.totalorder %s24, 0
    %p317 = por %p315, %p316
    %p318 = scmp.ne.s32.totalorder %s304, %s305
    %p319 = scmp.eq.s32.totalorder %s25, 3
    %p320 = por %p318, %p319
    %p322 = scmp.ne.s32.totalorder %s305, %s321
    %p323 = scmp.eq.s32.totalorder %s25, 0
    %p324 = por %p322, %p323
    %s325 = ssub.s32 %s27, %s34
    %p326 = scmp.eq.s32.totalorder %s325, 0
    %s328 = sadd.s32 %s327, 1
    %s329 = scalar_select %p326, %s327, %s328
    %p332 = pneg %p326
    %p333 = scmp.eq.s32.totalorder %s19, 3
    %p334 = por %p332, %p333
    %p335 = scmp.ne.s32.totalorder %s327, %s330
    %p336 = scmp.eq.s32.totalorder %s19, 0
    %p337 = por %p335, %p336
    %p338 = scmp.ne.s32.totalorder %s327, %s330
    %p339 = scmp.eq.s32.totalorder %s24, 3
    %p340 = por %p338, %p339
    %p341 = scmp.ne.s32.totalorder %s330, %s331
    %p342 = scmp.eq.s32.totalorder %s24, 0
    %p343 = por %p341, %p342
    %p344 = scmp.ne.s32.totalorder %s330, %s331
    %p345 = scmp.eq.s32.totalorder %s25, 3
    %p346 = por %p344, %p345
    %p348 = scmp.ne.s32.totalorder %s331, %s347
    %p349 = scmp.eq.s32.totalorder %s25, 0
    %p350 = por %p348, %p349
    %s351 = ssub.s32 %s27, %s34
    %p352 = scmp.eq.s32.totalorder %s351, 0
    %s354 = sadd.s32 %s353, 1
    %s355 = scalar_select %p352, %s353, %s354
    %p358 = pneg %p352
    %p359 = scmp.eq.s32.totalorder %s19, 3
    %p360 = por %p358, %p359
    %p361 = scmp.ne.s32.totalorder %s353, %s356
    %p362 = scmp.eq.s32.totalorder %s19, 0
    %p363 = por %p361, %p362
    %p364 = scmp.ne.s32.totalorder %s353, %s356
    %p365 = scmp.eq.s32.totalorder %s24, 3
    %p366 = por %p364, %p365
    %p367 = scmp.ne.s32.totalorder %s356, %s357
    %p368 = scmp.eq.s32.totalorder %s24, 0
    %p369 = por %p367, %p368
    %p370 = scmp.ne.s32.totalorder %s356, %s357
    %p371 = scmp.eq.s32.totalorder %s25, 3
    %p372 = por %p370, %p371
    %p374 = scmp.ne.s32.totalorder %s357, %s373
    %p375 = scmp.eq.s32.totalorder %s25, 0
    %p376 = por %p374, %p375
    %s377 = ssub.s32 %s26, %s38
    %p378 = scmp.eq.s32.totalorder %s377, 0
    %s380 = sadd.s32 %s379, 1
    %s381 = scalar_select %p378, %s379, %s380
    %p384 = pneg %p378
    %p385 = scmp.eq.s32.totalorder %s19, 3
    %p386 = por %p384, %p385
    %p387 = scmp.ne.s32.totalorder %s379, %s382
    %p388 = scmp.eq.s32.totalorder %s19, 0
    %p389 = por %p387, %p388
    %p390 = scmp.ne.s32.totalorder %s379, %s382
    %p391 = scmp.eq.s32.totalorder %s24, 3
    %p392 = por %p390, %p391
    %p393 = scmp.ne.s32.totalorder %s382, %s383
    %p394 = scmp.eq.s32.totalorder %s24, 0
    %p395 = por %p393, %p394
    %p396 = scmp.ne.s32.totalorder %s382, %s383
    %p397 = scmp.eq.s32.totalorder %s25, 3
    %p398 = por %p396, %p397
    %p400 = scmp.ne.s32.totalorder %s383, %s399
    %p401 = scmp.eq.s32.totalorder %s25, 0
    %p402 = por %p400, %p401
    %p403 = scmp.le.s32.totalorder 1, %s19
    %p404 = scmp.lt.s32.totalorder %s19, 5
    %p405 = pnand %p403, %p404
    %p406 = pneg %p405
    // Predicated region
    $region9: #{_encoder_forward_impl.1} parent=5 // pred_check
      _
    $region10: #{_encoder_forward_impl.1} parent=5 // pred_check_branch
      %408 = sbr.rel (%p405) target = $region12
    $region11: #{_encoder_forward_impl.1} parent=5 // pred_region
      %s409 = ssub.s32 %s19, 1
    $region12: #{_encoder_forward_impl.1} parent=5 // pred_fallthru
      _
    %p410 = scmp.lt.s32.totalorder %s19, 4
    // Predicated region
    $region13: #{_encoder_forward_impl.1} parent=5 // pred_check
      %p411 = pneg %p410
    $region14: #{_encoder_forward_impl.1} parent=5 // pred_check_branch
      %413 = sbr.rel (%p411) target = $region16
    $region15: #{_encoder_forward_impl.1} parent=5 // pred_region
      // Predicated region
      $region17: #{_encoder_forward_impl.1} parent=15 // pred_check
        %p414 = pneg %p51
      $region18: #{_encoder_forward_impl.1} parent=15 // pred_check_branch
        %416 = sbr.rel (%p414) target = $region20
      $region19: #{_encoder_forward_impl.1} parent=15 // pred_region
        %p417 = scmp.lt.s32.totalorder %s26, 1
        %s418 = scalar_select %p417, %s26, 1
        %s419 = smul.addr %s418, 2
        %s420 = smul.addr %s419, 8
        %s421 = scalar_lea.vmem %s0, %s420
      $region20: #{_encoder_forward_impl.1} parent=15 // pred_fallthru
        _
      // Predicated region
      $region21: #{_encoder_forward_impl.1} parent=15 // pred_check
        %p422 = pneg %p77
      $region22: #{_encoder_forward_impl.1} parent=15 // pred_check_branch
        %424 = sbr.rel (%p422) target = $region24
      $region23: #{_encoder_forward_impl.1} parent=15 // pred_region
        %p425 = scmp.lt.s32.totalorder %s27, 1
        %s426 = scalar_select %p425, %s27, 1
        %s427 = smul.addr %s426, 256
        %s428 = smul.addr %s427, 4
        %s429 = scalar_lea.vmem %s1, %s428
      $region24: #{_encoder_forward_impl.1} parent=15 // pred_fallthru
        _
      // Predicated region
      $region25: #{_encoder_forward_impl.1} parent=15 // pred_check
        %p430 = pneg %p103
      $region26: #{_encoder_forward_impl.1} parent=15 // pred_check_branch
        %432 = sbr.rel (%p430) target = $region28
      $region27: #{_encoder_forward_impl.1} parent=15 // pred_region
        %p433 = scmp.lt.s32.totalorder %s27, 1
        %s434 = scalar_select %p433, %s27, 1
        %s435 = smul.addr %s434, 8
        %s436 = scalar_lea.vmem %s2, %s435
      $region28: #{_encoder_forward_impl.1} parent=15 // pred_fallthru
        _
      // Predicated region
      $region29: #{_encoder_forward_impl.1} parent=15 // pred_check
        %p437 = pneg %p129
      $region30: #{_encoder_forward_impl.1} parent=15 // pred_check_branch
        %439 = sbr.rel (%p437) target = $region32
      $region31: #{_encoder_forward_impl.1} parent=15 // pred_region
        %p440 = scmp.lt.s32.totalorder %s27, 1
        %s441 = scalar_select %p440, %s27, 1
        %s442 = smul.addr %s441, 64
        %s443 = smul.addr %s442, 4
        %s444 = scalar_lea.vmem %s3, %s443
      $region32: #{_encoder_forward_impl.1} parent=15 // pred_fallthru
        _
      // Predicated region
      $region33: #{_encoder_forward_impl.1} parent=15 // pred_check
        %p445 = pneg %p155
      $region34: #{_encoder_forward_impl.1} parent=15 // pred_check_branch
        %447 = sbr.rel (%p445) target = $region36
      $region35: #{_encoder_forward_impl.1} parent=15 // pred_region
        %p448 = scmp.lt.s32.totalorder %s27, 1
        %s449 = scalar_select %p448, %s27, 1
        %s450 = smul.addr %s449, 2
        %s451 = scalar_lea.vmem %s4, %s450
      $region36: #{_encoder_forward_impl.1} parent=15 // pred_fallthru
        _
      // Predicated region
      $region37: #{_encoder_forward_impl.1} parent=15 // pred_check
        %p452 = pneg %p181
      $region38: #{_encoder_forward_impl.1} parent=15 // pred_check_branch
        %454 = sbr.rel (%p452) target = $region40
      $region39: #{_encoder_forward_impl.1} parent=15 // pred_region
        %p455 = scmp.lt.s32.totalorder %s27, 1
        %s456 = scalar_select %p455, %s27, 1
        %s457 = smul.addr %s456, 2
        %s458 = scalar_lea.vmem %s5, %s457
      $region40: #{_encoder_forward_impl.1} parent=15 // pred_fallthru
        _
      // Predicated region
      $region41: #{_encoder_forward_impl.1} parent=15 // pred_check
        %p459 = pneg %p207
      $region42: #{_encoder_forward_impl.1} parent=15 // pred_check_branch
        %461 = sbr.rel (%p459) target = $region44
      $region43: #{_encoder_forward_impl.1} parent=15 // pred_region
        %p462 = scmp.lt.s32.totalorder %s27, 1
        %s463 = scalar_select %p462, %s27, 1
        %s464 = smul.addr %s463, 2
        %s465 = scalar_lea.vmem %s6, %s464
      $region44: #{_encoder_forward_impl.1} parent=15 // pred_fallthru
        _
      // Predicated region
      $region45: #{_encoder_forward_impl.1} parent=15 // pred_check
        %p466 = pneg %p233
      $region46: #{_encoder_forward_impl.1} parent=15 // pred_check_branch
        %468 = sbr.rel (%p466) target = $region48
      $region47: #{_encoder_forward_impl.1} parent=15 // pred_region
        %p469 = scmp.lt.s32.totalorder %s27, 1
        %s470 = scalar_select %p469, %s27, 1
        %s471 = smul.addr %s470, 64
        %s472 = smul.addr %s471, 4
        %s473 = scalar_lea.vmem %s7, %s472
      $region48: #{_encoder_forward_impl.1} parent=15 // pred_fallthru
        _
      // Predicated region
      $region49: #{_encoder_forward_impl.1} parent=15 // pred_check
        %p474 = pneg %p259
      $region50: #{_encoder_forward_impl.1} parent=15 // pred_check_branch
        %476 = sbr.rel (%p474) target = $region52
      $region51: #{_encoder_forward_impl.1} parent=15 // pred_region
        %p477 = scmp.lt.s32.totalorder %s27, 1
        %s478 = scalar_select %p477, %s27, 1
        %s479 = smul.addr %s478, 2
        %s480 = scalar_lea.vmem %s8, %s479
      $region52: #{_encoder_forward_impl.1} parent=15 // pred_fallthru
        _
      // Predicated region
      $region53: #{_encoder_forward_impl.1} parent=15 // pred_check
        %p481 = pneg %p285
      $region54: #{_encoder_forward_impl.1} parent=15 // pred_check_branch
        %483 = sbr.rel (%p481) target = $region56
      $region55: #{_encoder_forward_impl.1} parent=15 // pred_region
        %p484 = scmp.lt.s32.totalorder %s27, 1
        %s485 = scalar_select %p484, %s27, 1
        %s486 = smul.addr %s485, 64
        %s487 = smul.addr %s486, 4
        %s488 = scalar_lea.vmem %s9, %s487
      $region56: #{_encoder_forward_impl.1} parent=15 // pred_fallthru
        _
      // Predicated region
      $region57: #{_encoder_forward_impl.1} parent=15 // pred_check
        %p489 = pneg %p311
      $region58: #{_encoder_forward_impl.1} parent=15 // pred_check_branch
        %491 = sbr.rel (%p489) target = $region60
      $region59: #{_encoder_forward_impl.1} parent=15 // pred_region
        %p492 = scmp.lt.s32.totalorder %s27, 1
        %s493 = scalar_select %p492, %s27, 1
        %s494 = smul.addr %s493, 2
        %s495 = scalar_lea.vmem %s10, %s494
      $region60: #{_encoder_forward_impl.1} parent=15 // pred_fallthru
        _
      // Predicated region
      $region61: #{_encoder_forward_impl.1} parent=15 // pred_check
        %p496 = pneg %p337
      $region62: #{_encoder_forward_impl.1} parent=15 // pred_check_branch
        %498 = sbr.rel (%p496) target = $region64
      $region63: #{_encoder_forward_impl.1} parent=15 // pred_region
        %p499 = scmp.lt.s32.totalorder %s27, 1
        %s500 = scalar_select %p499, %s27, 1
        %s501 = smul.addr %s500, 2
        %s502 = scalar_lea.vmem %s11, %s501
      $region64: #{_encoder_forward_impl.1} parent=15 // pred_fallthru
        _
      // Predicated region
      $region65: #{_encoder_forward_impl.1} parent=15 // pred_check
        %p503 = pneg %p363
      $region66: #{_encoder_forward_impl.1} parent=15 // pred_check_branch
        %505 = sbr.rel (%p503) target = $region68
      $region67: #{_encoder_forward_impl.1} parent=15 // pred_region
        %p506 = scmp.lt.s32.totalorder %s27, 1
        %s507 = scalar_select %p506, %s27, 1
        %s508 = smul.addr %s507, 2
        %s509 = scalar_lea.vmem %s12, %s508
      $region68: #{_encoder_forward_impl.1} parent=15 // pred_fallthru
        _
    $region16: #{_encoder_forward_impl.1} parent=5 // pred_fallthru
      _
    %p510 = scmp.le.s32.totalorder 1, %s19
    %p511 = scmp.lt.s32.totalorder %s19, 5
    %p512 = pnand %p510, %p511
    %p513 = pneg %p512
    // Predicated region
    $region69: #{_encoder_forward_impl.1} parent=5 // pred_check
      _
    $region70: #{_encoder_forward_impl.1} parent=5 // pred_check_branch
      %515 = sbr.rel (%p512) target = $region72
    $region71: #{_encoder_forward_impl.1} parent=5 // pred_region
      %s516 = ssub.s32 %s19, 1
      %p517 = scmp.lt.s32.totalorder %s28, 1
      %s518 = scalar_select %p517, %s28, 1
      %s519 = smul.addr %s518, 2
      %s520 = smul.addr %s519, 8
      %s521 = scalar_lea.vmem %s0, %s520
      %p522 = pneg %p57
      %p523 = pneg %p54
      %p524 = scmp.lt.s32.totalorder %s29, 1
      %s525 = scalar_select %p524, %s29, 1
      %s526 = smul.addr %s525, 256
      %s527 = smul.addr %s526, 4
      %s528 = scalar_lea.vmem %s1, %s527
      %p529 = pneg %p83
      %p530 = pneg %p80
      %p531 = scmp.lt.s32.totalorder %s29, 1
      %s532 = scalar_select %p531, %s29, 1
      %s533 = smul.addr %s532, 8
      %s534 = scalar_lea.vmem %s2, %s533
      %p535 = pneg %p109
      %p536 = pneg %p106
      %p537 = scmp.lt.s32.totalorder %s29, 1
      %s538 = scalar_select %p537, %s29, 1
      %s539 = smul.addr %s538, 64
      %s540 = smul.addr %s539, 4
      %s541 = scalar_lea.vmem %s3, %s540
      %p542 = pneg %p135
      %p543 = pneg %p132
      %p544 = scmp.lt.s32.totalorder %s29, 1
      %s545 = scalar_select %p544, %s29, 1
      %s546 = smul.addr %s545, 2
      %s547 = scalar_lea.vmem %s4, %s546
      %p548 = pneg %p161
      %p549 = pneg %p158
      %p550 = scmp.lt.s32.totalorder %s29, 1
      %s551 = scalar_select %p550, %s29, 1
      %s552 = smul.addr %s551, 2
      %s553 = scalar_lea.vmem %s5, %s552
      %p554 = pneg %p187
      %p555 = pneg %p184
      %p556 = scmp.lt.s32.totalorder %s29, 1
      %s557 = scalar_select %p556, %s29, 1
      %s558 = smul.addr %s557, 2
      %s559 = scalar_lea.vmem %s6, %s558
      %p560 = pneg %p213
      %p561 = pneg %p210
      %p562 = scmp.lt.s32.totalorder %s29, 1
      %s563 = scalar_select %p562, %s29, 1
      %s564 = smul.addr %s563, 64
      %s565 = smul.addr %s564, 4
      %s566 = scalar_lea.vmem %s7, %s565
      %p567 = pneg %p239
      %p568 = pneg %p236
      %p569 = scmp.lt.s32.totalorder %s29, 1
      %s570 = scalar_select %p569, %s29, 1
      %s571 = smul.addr %s570, 2
      %s572 = scalar_lea.vmem %s8, %s571
      %p573 = pneg %p265
      %p574 = pneg %p262
      %p575 = scmp.lt.s32.totalorder %s29, 1
      %s576 = scalar_select %p575, %s29, 1
      %s577 = smul.addr %s576, 64
      %s578 = smul.addr %s577, 4
      %s579 = scalar_lea.vmem %s9, %s578
      %p580 = pneg %p291
      %p581 = pneg %p288
      %p582 = scmp.lt.s32.totalorder %s29, 1
      %s583 = scalar_select %p582, %s29, 1
      %s584 = smul.addr %s583, 2
      %s585 = scalar_lea.vmem %s10, %s584
      %p586 = pneg %p317
      %p587 = pneg %p314
      %p588 = scmp.lt.s32.totalorder %s29, 1
      %s589 = scalar_select %p588, %s29, 1
      %s590 = smul.addr %s589, 2
      %s591 = scalar_lea.vmem %s11, %s590
      %p592 = pneg %p343
      %p593 = pneg %p340
      %p594 = scmp.lt.s32.totalorder %s29, 1
      %s595 = scalar_select %p594, %s29, 1
      %s596 = smul.addr %s595, 2
      %s597 = scalar_lea.vmem %s12, %s596
      %p598 = pneg %p369
      %p599 = pneg %p366
      %p600 = pneg %p395
      %p601 = pneg %p392
      %p602 = scmp.lt.s32.totalorder %s28, 1
      %s603 = scalar_select %p602, %s28, 1
      %s604 = smul.addr %s603, 2
      %s605 = smul.addr %s604, 8
      %s606 = scalar_lea.vmem %s13, %s605
      %p607 = scmp.lt.s32.totalorder %s28, 1
      %s608 = scalar_select %p607, %s28, 1
      %s609 = smul.addr %s608, 2
      %s610 = smul.addr %s609, 8
      %s611 = scalar_lea.vmem %s0, %s610
      %p612 = scmp.lt.s32.totalorder %s29, 1
      %s613 = scalar_select %p612, %s29, 1
      %s614 = smul.addr %s613, 256
      %s615 = smul.addr %s614, 4
      %s616 = scalar_lea.vmem %s1, %s615
      %p617 = scmp.lt.s32.totalorder %s29, 1
      %s618 = scalar_select %p617, %s29, 1
      %s619 = smul.addr %s618, 8
      %s620 = scalar_lea.vmem %s2, %s619
      %p621 = scmp.lt.s32.totalorder %s29, 1
      %s622 = scalar_select %p621, %s29, 1
      %s623 = smul.addr %s622, 64
      %s624 = smul.addr %s623, 4
      %s625 = scalar_lea.vmem %s3, %s624
      %p626 = scmp.lt.s32.totalorder %s29, 1
      %s627 = scalar_select %p626, %s29, 1
      %s628 = smul.addr %s627, 2
      %s629 = scalar_lea.vmem %s4, %s628
      %p630 = scmp.lt.s32.totalorder %s29, 1
      %s631 = scalar_select %p630, %s29, 1
      %s632 = smul.addr %s631, 2
      %s633 = scalar_lea.vmem %s5, %s632
      %p634 = scmp.lt.s32.totalorder %s29, 1
      %s635 = scalar_select %p634, %s29, 1
      %s636 = smul.addr %s635, 2
      %s637 = scalar_lea.vmem %s6, %s636
      %p638 = scmp.lt.s32.totalorder %s29, 1
      %s639 = scalar_select %p638, %s29, 1
      %s640 = smul.addr %s639, 64
      %s641 = smul.addr %s640, 4
      %s642 = scalar_lea.vmem %s7, %s641
      %p643 = scmp.lt.s32.totalorder %s29, 1
      %s644 = scalar_select %p643, %s29, 1
      %s645 = smul.addr %s644, 2
      %s646 = scalar_lea.vmem %s8, %s645
      %p647 = scmp.lt.s32.totalorder %s29, 1
      %s648 = scalar_select %p647, %s29, 1
      %s649 = smul.addr %s648, 64
      %s650 = smul.addr %s649, 4
      %s651 = scalar_lea.vmem %s9, %s650
      %p652 = scmp.lt.s32.totalorder %s29, 1
      %s653 = scalar_select %p652, %s29, 1
      %s654 = smul.addr %s653, 2
      %s655 = scalar_lea.vmem %s10, %s654
      %p656 = scmp.lt.s32.totalorder %s29, 1
      %s657 = scalar_select %p656, %s29, 1
      %s658 = smul.addr %s657, 2
      %s659 = scalar_lea.vmem %s11, %s658
      %p660 = scmp.lt.s32.totalorder %s29, 1
      %s661 = scalar_select %p660, %s29, 1
      %s662 = smul.addr %s661, 2
      %s663 = scalar_lea.vmem %s12, %s662
      %p664 = scmp.lt.s32.totalorder %s28, 1
      %s665 = scalar_select %p664, %s28, 1
      %s666 = smul.addr %s665, 2
      %s667 = smul.addr %s666, 8
      %s668 = scalar_lea.vmem %s13, %s667
      %p670 = scmp.eq.s32.totalorder %s29, 0
      // Predicated region
      $region73: #{_encoder_forward_impl.1} parent=71 // pred_check
        %p671 = pneg %p670
      $region74: #{_encoder_forward_impl.1} parent=71 // pred_check_branch
        %673 = sbr.rel (%p671) target = $region76
      $region75: #{_encoder_forward_impl.1} parent=71 // pred_region
        %v674 = vld [vmem:[%s611] sm:$0xff]
        %v675 = vld [vmem:[%s611 + $0x8] sm:$0xff]
        %676 = vst [vmem:[%s668] sm:$0xff] %v674
        %677 = vst [vmem:[%s668 + $0x8] sm:$0xff] %v675
      $region76: #{_encoder_forward_impl.1} parent=71 // pred_fallthru
        _
      %v678 = vld [vmem:[%s668] sm:$0xff]
      %v679 = vld [vmem:[%s668 + $0x8] sm:$0xff]
      %v680 = vpack.c.bf16 %v679, %v678
      %v681 = vld [vmem:[%s616] sm:$0xff]
      %v682 = vld [vmem:[%s616 + $0x8] sm:$0xff]
      %v683 = vld [vmem:[%s616 + $0x10] sm:$0xff]
      %v684 = vld [vmem:[%s616 + $0x18] sm:$0xff]
      %v685 = vld [vmem:[%s616 + $0x20] sm:$0xff]
      %v686 = vld [vmem:[%s616 + $0x28] sm:$0xff]
      %v687 = vld [vmem:[%s616 + $0x30] sm:$0xff]
      %v688 = vld [vmem:[%s616 + $0x38] sm:$0xff]
      %v689 = vld [vmem:[%s616 + $0x40] sm:$0xff]
      %v690 = vld [vmem:[%s616 + $0x48] sm:$0xff]
      %v691 = vld [vmem:[%s616 + $0x50] sm:$0xff]
      %v692 = vld [vmem:[%s616 + $0x58] sm:$0xff]
      %v693 = vld [vmem:[%s616 + $0x60] sm:$0xff]
      %v694 = vld [vmem:[%s616 + $0x68] sm:$0xff]
      %v695 = vld [vmem:[%s616 + $0x70] sm:$0xff]
      %v696 = vld [vmem:[%s616 + $0x78] sm:$0xff]
      %v697 = vld [vmem:[%s616 + $0x80] sm:$0xff]
      %v698 = vld [vmem:[%s616 + $0x88] sm:$0xff]
      %v699 = vld [vmem:[%s616 + $0x90] sm:$0xff]
      %v700 = vld [vmem:[%s616 + $0x98] sm:$0xff]
      %v701 = vld [vmem:[%s616 + $0xa0] sm:$0xff]
      %v702 = vld [vmem:[%s616 + $0xa8] sm:$0xff]
      %v703 = vld [vmem:[%s616 + $0xb0] sm:$0xff]
      %v704 = vld [vmem:[%s616 + $0xb8] sm:$0xff]
      %v705 = vld [vmem:[%s616 + $0xc0] sm:$0xff]
      %v706 = vld [vmem:[%s616 + $0xc8] sm:$0xff]
      %v707 = vld [vmem:[%s616 + $0xd0] sm:$0xff]
      %v708 = vld [vmem:[%s616 + $0xd8] sm:$0xff]
      %v709 = vld [vmem:[%s616 + $0xe0] sm:$0xff]
      %v710 = vld [vmem:[%s616 + $0xe8] sm:$0xff]
      %v711 = vld [vmem:[%s616 + $0xf0] sm:$0xff]
      %v712 = vld [vmem:[%s616 + $0xf8] sm:$0xff]
      %v713 = vld [vmem:[%s616 + $0x100] sm:$0xff]
      %v714 = vld [vmem:[%s616 + $0x108] sm:$0xff]
      %v715 = vld [vmem:[%s616 + $0x110] sm:$0xff]
      %v716 = vld [vmem:[%s616 + $0x118] sm:$0xff]
      %v717 = vld [vmem:[%s616 + $0x120] sm:$0xff]
      %v718 = vld [vmem:[%s616 + $0x128] sm:$0xff]
      %v719 = vld [vmem:[%s616 + $0x130] sm:$0xff]
      %v720 = vld [vmem:[%s616 + $0x138] sm:$0xff]
      %v721 = vld [vmem:[%s616 + $0x140] sm:$0xff]
      %v722 = vld [vmem:[%s616 + $0x148] sm:$0xff]
      %v723 = vld [vmem:[%s616 + $0x150] sm:$0xff]
      %v724 = vld [vmem:[%s616 + $0x158] sm:$0xff]
      %v725 = vld [vmem:[%s616 + $0x160] sm:$0xff]
      %v726 = vld [vmem:[%s616 + $0x168] sm:$0xff]
      %v727 = vld [vmem:[%s616 + $0x170] sm:$0xff]
      %v728 = vld [vmem:[%s616 + $0x178] sm:$0xff]
      %v729 = vld [vmem:[%s616 + $0x180] sm:$0xff]
      %v730 = vld [vmem:[%s616 + $0x188] sm:$0xff]
      %v731 = vld [vmem:[%s616 + $0x190] sm:$0xff]
      %v732 = vld [vmem:[%s616 + $0x198] sm:$0xff]
      %v733 = vld [vmem:[%s616 + $0x1a0] sm:$0xff]
      %v734 = vld [vmem:[%s616 + $0x1a8] sm:$0xff]
      %v735 = vld [vmem:[%s616 + $0x1b0] sm:$0xff]
      %v736 = vld [vmem:[%s616 + $0x1b8] sm:$0xff]
      %v737 = vld [vmem:[%s616 + $0x1c0] sm:$0xff]
      %v738 = vld [vmem:[%s616 + $0x1c8] sm:$0xff]
      %v739 = vld [vmem:[%s616 + $0x1d0] sm:$0xff]
      %v740 = vld [vmem:[%s616 + $0x1d8] sm:$0xff]
      %v741 = vld [vmem:[%s616 + $0x1e0] sm:$0xff]
      %v742 = vld [vmem:[%s616 + $0x1e8] sm:$0xff]
      %v743 = vld [vmem:[%s616 + $0x1f0] sm:$0xff]
      %v744 = vld [vmem:[%s616 + $0x1f8] sm:$0xff]
      %v745 = vld [vmem:[%s616 + $0x200] sm:$0xff]
      %v746 = vld [vmem:[%s616 + $0x208] sm:$0xff]
      %v747 = vld [vmem:[%s616 + $0x210] sm:$0xff]
      %v748 = vld [vmem:[%s616 + $0x218] sm:$0xff]
      %v749 = vld [vmem:[%s616 + $0x220] sm:$0xff]
      %v750 = vld [vmem:[%s616 + $0x228] sm:$0xff]
      %v751 = vld [vmem:[%s616 + $0x230] sm:$0xff]
      %v752 = vld [vmem:[%s616 + $0x238] sm:$0xff]
      %v753 = vld [vmem:[%s616 + $0x240] sm:$0xff]
      %v754 = vld [vmem:[%s616 + $0x248] sm:$0xff]
      %v755 = vld [vmem:[%s616 + $0x250] sm:$0xff]
      %v756 = vld [vmem:[%s616 + $0x258] sm:$0xff]
      %v757 = vld [vmem:[%s616 + $0x260] sm:$0xff]
      %v758 = vld [vmem:[%s616 + $0x268] sm:$0xff]
      %v759 = vld [vmem:[%s616 + $0x270] sm:$0xff]
      %v760 = vld [vmem:[%s616 + $0x278] sm:$0xff]
      %v761 = vld [vmem:[%s616 + $0x280] sm:$0xff]
      %v762 = vld [vmem:[%s616 + $0x288] sm:$0xff]
      %v763 = vld [vmem:[%s616 + $0x290] sm:$0xff]
      %v764 = vld [vmem:[%s616 + $0x298] sm:$0xff]
      %v765 = vld [vmem:[%s616 + $0x2a0] sm:$0xff]
      %v766 = vld [vmem:[%s616 + $0x2a8] sm:$0xff]
      %v767 = vld [vmem:[%s616 + $0x2b0] sm:$0xff]
      %v768 = vld [vmem:[%s616 + $0x2b8] sm:$0xff]
      %v769 = vld [vmem:[%s616 + $0x2c0] sm:$0xff]
      %v770 = vld [vmem:[%s616 + $0x2c8] sm:$0xff]
      %v771 = vld [vmem:[%s616 + $0x2d0] sm:$0xff]
      %v772 = vld [vmem:[%s616 + $0x2d8] sm:$0xff]
      %v773 = vld [vmem:[%s616 + $0x2e0] sm:$0xff]
      %v774 = vld [vmem:[%s616 + $0x2e8] sm:$0xff]
      %v775 = vld [vmem:[%s616 + $0x2f0] sm:$0xff]
      %v776 = vld [vmem:[%s616 + $0x2f8] sm:$0xff]
      %v777 = vld [vmem:[%s616 + $0x300] sm:$0xff]
      %v778 = vld [vmem:[%s616 + $0x308] sm:$0xff]
      %v779 = vld [vmem:[%s616 + $0x310] sm:$0xff]
      %v780 = vld [vmem:[%s616 + $0x318] sm:$0xff]
      %v781 = vld [vmem:[%s616 + $0x320] sm:$0xff]
      %v782 = vld [vmem:[%s616 + $0x328] sm:$0xff]
      %v783 = vld [vmem:[%s616 + $0x330] sm:$0xff]
      %v784 = vld [vmem:[%s616 + $0x338] sm:$0xff]
      %v785 = vld [vmem:[%s616 + $0x340] sm:$0xff]
      %v786 = vld [vmem:[%s616 + $0x348] sm:$0xff]
      %v787 = vld [vmem:[%s616 + $0x350] sm:$0xff]
      %v788 = vld [vmem:[%s616 + $0x358] sm:$0xff]
      %v789 = vld [vmem:[%s616 + $0x360] sm:$0xff]
      %v790 = vld [vmem:[%s616 + $0x368] sm:$0xff]
      %v791 = vld [vmem:[%s616 + $0x370] sm:$0xff]
      %v792 = vld [vmem:[%s616 + $0x378] sm:$0xff]
      %v793 = vld [vmem:[%s616 + $0x380] sm:$0xff]
      %v794 = vld [vmem:[%s616 + $0x388] sm:$0xff]
      %v795 = vld [vmem:[%s616 + $0x390] sm:$0xff]
      %v796 = vld [vmem:[%s616 + $0x398] sm:$0xff]
      %v797 = vld [vmem:[%s616 + $0x3a0] sm:$0xff]
      %v798 = vld [vmem:[%s616 + $0x3a8] sm:$0xff]
      %v799 = vld [vmem:[%s616 + $0x3b0] sm:$0xff]
      %v800 = vld [vmem:[%s616 + $0x3b8] sm:$0xff]
      %v801 = vld [vmem:[%s616 + $0x3c0] sm:$0xff]
      %v802 = vld [vmem:[%s616 + $0x3c8] sm:$0xff]
      %v803 = vld [vmem:[%s616 + $0x3d0] sm:$0xff]
      %v804 = vld [vmem:[%s616 + $0x3d8] sm:$0xff]
      %v805 = vld [vmem:[%s616 + $0x3e0] sm:$0xff]
      %v806 = vld [vmem:[%s616 + $0x3e8] sm:$0xff]
      %v807 = vld [vmem:[%s616 + $0x3f0] sm:$0xff]
      %v808 = vld [vmem:[%s616 + $0x3f8] sm:$0xff]
      %v809 = vld [vmem:[%s620] sm:$0x3]
      %v810 = vld [vmem:[%s620 + $0x2] sm:$0x3]
      %v811 = vld [vmem:[%s620 + $0x4] sm:$0x3]
      %v812 = vld [vmem:[%s620 + $0x6] sm:$0x3]
      %v813 = vld [vmem:[%s625] sm:$0xff]
      %v814 = vld [vmem:[%s625 + $0x8] sm:$0xff]
      %v815 = vld [vmem:[%s625 + $0x10] sm:$0xff]
      %v816 = vld [vmem:[%s625 + $0x18] sm:$0xff]
      %v817 = vld [vmem:[%s625 + $0x20] sm:$0xff]
      %v818 = vld [vmem:[%s625 + $0x28] sm:$0xff]
      %v819 = vld [vmem:[%s625 + $0x30] sm:$0xff]
      %v820 = vld [vmem:[%s625 + $0x38] sm:$0xff]
      %v821 = vld [vmem:[%s625 + $0x40] sm:$0xff]
      %v822 = vld [vmem:[%s625 + $0x48] sm:$0xff]
      %v823 = vld [vmem:[%s625 + $0x50] sm:$0xff]
      %v824 = vld [vmem:[%s625 + $0x58] sm:$0xff]
      %v825 = vld [vmem:[%s625 + $0x60] sm:$0xff]
      %v826 = vld [vmem:[%s625 + $0x68] sm:$0xff]
      %v827 = vld [vmem:[%s625 + $0x70] sm:$0xff]
      %v828 = vld [vmem:[%s625 + $0x78] sm:$0xff]
      %v829 = vld [vmem:[%s625 + $0x80] sm:$0xff]
      %v830 = vld [vmem:[%s625 + $0x88] sm:$0xff]
      %v831 = vld [vmem:[%s625 + $0x90] sm:$0xff]
      %v832 = vld [vmem:[%s625 + $0x98] sm:$0xff]
      %v833 = vld [vmem:[%s625 + $0xa0] sm:$0xff]
      %v834 = vld [vmem:[%s625 + $0xa8] sm:$0xff]
      %v835 = vld [vmem:[%s625 + $0xb0] sm:$0xff]
      %v836 = vld [vmem:[%s625 + $0xb8] sm:$0xff]
      %v837 = vld [vmem:[%s625 + $0xc0] sm:$0xff]
      %v838 = vld [vmem:[%s625 + $0xc8] sm:$0xff]
      %v839 = vld [vmem:[%s625 + $0xd0] sm:$0xff]
      %v840 = vld [vmem:[%s625 + $0xd8] sm:$0xff]
      %v841 = vld [vmem:[%s625 + $0xe0] sm:$0xff]
      %v842 = vld [vmem:[%s625 + $0xe8] sm:$0xff]
      %v843 = vld [vmem:[%s625 + $0xf0] sm:$0xff]
      %v844 = vld [vmem:[%s625 + $0xf8] sm:$0xff]
      %v845 = vld [vmem:[%s629] sm:$0x3]
      %v850 = vperm.slane %v809, 0
      %v851 = vperm.slane %v809, 1
      %v852 = vperm.slane %v810, 0
      %v853 = vperm.slane %v810, 1
      %v854 = vperm.slane %v811, 0
      %v855 = vperm.slane %v811, 1
      %v856 = vperm.slane %v812, 0
      %v857 = vperm.slane %v812, 1
      %v867 = vunpack.c.l.b16 %v680
      %v868 = vunpack.c.h.b16 %v680
      %v869 = vpack.c.b16 %v867, %v867
      %v870 = vpack.c.b16 %v868, %v868
      %v905 = vunpack.c.l.b16 %v681
      %v906 = vunpack.c.h.b16 %v681
      %v907 = vunpack.c.l.b16 %v682
      %v908 = vunpack.c.h.b16 %v682
      %v909 = vunpack.c.l.b16 %v683
      %v910 = vunpack.c.h.b16 %v683
      %v911 = vunpack.c.l.b16 %v684
      %v912 = vunpack.c.h.b16 %v684
      %v913 = vunpack.c.l.b16 %v685
      %v914 = vunpack.c.h.b16 %v685
      %v915 = vunpack.c.l.b16 %v686
      %v916 = vunpack.c.h.b16 %v686
      %v917 = vunpack.c.l.b16 %v687
      %v918 = vunpack.c.h.b16 %v687
      %v919 = vunpack.c.l.b16 %v688
      %v920 = vunpack.c.h.b16 %v688
      %v921 = vunpack.c.l.b16 %v689
      %v922 = vunpack.c.h.b16 %v689
      %v923 = vunpack.c.l.b16 %v690
      %v924 = vunpack.c.h.b16 %v690
      %v925 = vunpack.c.l.b16 %v691
      %v926 = vunpack.c.h.b16 %v691
      %v927 = vunpack.c.l.b16 %v692
      %v928 = vunpack.c.h.b16 %v692
      %v929 = vunpack.c.l.b16 %v693
      %v930 = vunpack.c.h.b16 %v693
      %v931 = vunpack.c.l.b16 %v694
      %v932 = vunpack.c.h.b16 %v694
      %v933 = vunpack.c.l.b16 %v695
      %v934 = vunpack.c.h.b16 %v695
      %v935 = vunpack.c.l.b16 %v696
      %v936 = vunpack.c.h.b16 %v696
      %v937 = vunpack.c.l.b16 %v697
      %v938 = vunpack.c.h.b16 %v697
      %v939 = vunpack.c.l.b16 %v698
      %v940 = vunpack.c.h.b16 %v698
      %v941 = vunpack.c.l.b16 %v699
      %v942 = vunpack.c.h.b16 %v699
      %v943 = vunpack.c.l.b16 %v700
      %v944 = vunpack.c.h.b16 %v700
      %v945 = vunpack.c.l.b16 %v701
      %v946 = vunpack.c.h.b16 %v701
      %v947 = vunpack.c.l.b16 %v702
      %v948 = vunpack.c.h.b16 %v702
      %v949 = vunpack.c.l.b16 %v703
      %v950 = vunpack.c.h.b16 %v703
      %v951 = vunpack.c.l.b16 %v704
      %v952 = vunpack.c.h.b16 %v704
      %v953 = vunpack.c.l.b16 %v705
      %v954 = vunpack.c.h.b16 %v705
      %v955 = vunpack.c.l.b16 %v706
      %v956 = vunpack.c.h.b16 %v706
      %v957 = vunpack.c.l.b16 %v707
      %v958 = vunpack.c.h.b16 %v707
      %v959 = vunpack.c.l.b16 %v708
      %v960 = vunpack.c.h.b16 %v708
      %v961 = vunpack.c.l.b16 %v709
      %v962 = vunpack.c.h.b16 %v709
      %v963 = vunpack.c.l.b16 %v710
      %v964 = vunpack.c.h.b16 %v710
      %v965 = vunpack.c.l.b16 %v711
      %v966 = vunpack.c.h.b16 %v711
      %v967 = vunpack.c.l.b16 %v712
      %v968 = vunpack.c.h.b16 %v712
      %v969 = vpack.c.b16 %v907, %v905
      %v970 = vpack.c.b16 %v908, %v906
      %v971 = vpack.c.b16 %v911, %v909
      %v972 = vpack.c.b16 %v912, %v910
      %v973 = vpack.c.b16 %v915, %v913
      %v974 = vpack.c.b16 %v916, %v914
      %v975 = vpack.c.b16 %v919, %v917
      %v976 = vpack.c.b16 %v920, %v918
      %v977 = vpack.c.b16 %v923, %v921
      %v978 = vpack.c.b16 %v924, %v922
      %v979 = vpack.c.b16 %v927, %v925
      %v980 = vpack.c.b16 %v928, %v926
      %v981 = vpack.c.b16 %v931, %v929
      %v982 = vpack.c.b16 %v932, %v930
      %v983 = vpack.c.b16 %v935, %v933
      %v984 = vpack.c.b16 %v936, %v934
      %v985 = vpack.c.b16 %v939, %v937
      %v986 = vpack.c.b16 %v940, %v938
      %v987 = vpack.c.b16 %v943, %v941
      %v988 = vpack.c.b16 %v944, %v942
      %v989 = vpack.c.b16 %v947, %v945
      %v990 = vpack.c.b16 %v948, %v946
      %v991 = vpack.c.b16 %v951, %v949
      %v992 = vpack.c.b16 %v952, %v950
      %v993 = vpack.c.b16 %v955, %v953
      %v994 = vpack.c.b16 %v956, %v954
      %v995 = vpack.c.b16 %v959, %v957
      %v996 = vpack.c.b16 %v960, %v958
      %v997 = vpack.c.b16 %v963, %v961
      %v998 = vpack.c.b16 %v964, %v962
      %v999 = vpack.c.b16 %v967, %v965
      %v1000 = vpack.c.b16 %v968, %v966
      %1033 = vmatpush.bf16.msra.mxu0 %v983
      %1034 = vmatpush.bf16.msra.mxu0 %v981
      %1035 = vmatpush.bf16.msra.mxu0 %v979
      %1036 = vmatpush.bf16.msra.mxu0 %v977
      %1037 = vmatpush.bf16.msra.mxu0 %v975
      %1038 = vmatpush.bf16.msra.mxu0 %v973
      %1039 = vmatpush.bf16.msra.mxu0 %v971
      %1040 = vmatpush.bf16.msra.mxu0 %v969
      %1041 = vmatmul.bf16.gmra.mxu0 %v869
      %v1042 = vpop.f32.mrf.mxu0
      %v1043 = vadd.f32 %v850, %v1042
      %v1044 = vpop.f32.mrf.mxu0
      %1045 = vdwg.mxu0
      %1046 = vmatpush.bf16.msra.mxu0 %v999
      %1047 = vmatpush.bf16.msra.mxu0 %v997
      %1048 = vmatpush.bf16.msra.mxu0 %v995
      %1049 = vmatpush.bf16.msra.mxu0 %v993
      %1050 = vmatpush.bf16.msra.mxu0 %v991
      %1051 = vmatpush.bf16.msra.mxu0 %v989
      %1052 = vmatpush.bf16.msra.mxu0 %v987
      %1053 = vmatpush.bf16.msra.mxu0 %v985
      %1054 = vmatmul.bf16.gmra.mxu0 %v870
      %v1055 = vpop.f32.mrf.mxu0
      %v1056 = vadd.f32 %v1043, %v1055
      %v1057 = vpop.f32.mrf.mxu0
      %1058 = vdwg.mxu0
      %1059 = vmatpush.bf16.msra.mxu0 %v984
      %1060 = vmatpush.bf16.msra.mxu0 %v982
      %1061 = vmatpush.bf16.msra.mxu0 %v980
      %1062 = vmatpush.bf16.msra.mxu0 %v978
      %1063 = vmatpush.bf16.msra.mxu0 %v976
      %1064 = vmatpush.bf16.msra.mxu0 %v974
      %1065 = vmatpush.bf16.msra.mxu0 %v972
      %1066 = vmatpush.bf16.msra.mxu0 %v970
      %1067 = vmatmul.bf16.gmra.mxu0 %v869
      %v1068 = vpop.f32.mrf.mxu0
      %v1069 = vadd.f32 %v851, %v1068
      %v1070 = vpop.f32.mrf.mxu0
      %1071 = vdwg.mxu0
      %1072 = vmatpush.bf16.msra.mxu0 %v1000
      %1073 = vmatpush.bf16.msra.mxu0 %v998
      %1074 = vmatpush.bf16.msra.mxu0 %v996
      %1075 = vmatpush.bf16.msra.mxu0 %v994
      %1076 = vmatpush.bf16.msra.mxu0 %v992
      %1077 = vmatpush.bf16.msra.mxu0 %v990
      %1078 = vmatpush.bf16.msra.mxu0 %v988
      %1079 = vmatpush.bf16.msra.mxu0 %v986
      %1080 = vmatmul.bf16.gmra.mxu0 %v870
      %v1081 = vpop.f32.mrf.mxu0
      %v1082 = vadd.f32 %v1069, %v1081
      %v1083 = vpop.f32.mrf.mxu0
      %1084 = vdwg.mxu0
      %v1117 = vunpack.c.l.b16 %v713
      %v1118 = vunpack.c.h.b16 %v713
      %v1119 = vunpack.c.l.b16 %v714
      %v1120 = vunpack.c.h.b16 %v714
      %v1121 = vunpack.c.l.b16 %v715
      %v1122 = vunpack.c.h.b16 %v715
      %v1123 = vunpack.c.l.b16 %v716
      %v1124 = vunpack.c.h.b16 %v716
      %v1125 = vunpack.c.l.b16 %v717
      %v1126 = vunpack.c.h.b16 %v717
      %v1127 = vunpack.c.l.b16 %v718
      %v1128 = vunpack.c.h.b16 %v718
      %v1129 = vunpack.c.l.b16 %v719
      %v1130 = vunpack.c.h.b16 %v719
      %v1131 = vunpack.c.l.b16 %v720
      %v1132 = vunpack.c.h.b16 %v720
      %v1133 = vunpack.c.l.b16 %v721
      %v1134 = vunpack.c.h.b16 %v721
      %v1135 = vunpack.c.l.b16 %v722
      %v1136 = vunpack.c.h.b16 %v722
      %v1137 = vunpack.c.l.b16 %v723
      %v1138 = vunpack.c.h.b16 %v723
      %v1139 = vunpack.c.l.b16 %v724
      %v1140 = vunpack.c.h.b16 %v724
      %v1141 = vunpack.c.l.b16 %v725
      %v1142 = vunpack.c.h.b16 %v725
      %v1143 = vunpack.c.l.b16 %v726
      %v1144 = vunpack.c.h.b16 %v726
      %v1145 = vunpack.c.l.b16 %v727
      %v1146 = vunpack.c.h.b16 %v727
      %v1147 = vunpack.c.l.b16 %v728
      %v1148 = vunpack.c.h.b16 %v728
      %v1149 = vunpack.c.l.b16 %v729
      %v1150 = vunpack.c.h.b16 %v729
      %v1151 = vunpack.c.l.b16 %v730
      %v1152 = vunpack.c.h.b16 %v730
      %v1153 = vunpack.c.l.b16 %v731
      %v1154 = vunpack.c.h.b16 %v731
      %v1155 = vunpack.c.l.b16 %v732
      %v1156 = vunpack.c.h.b16 %v732
      %v1157 = vunpack.c.l.b16 %v733
      %v1158 = vunpack.c.h.b16 %v733
      %v1159 = vunpack.c.l.b16 %v734
      %v1160 = vunpack.c.h.b16 %v734
      %v1161 = vunpack.c.l.b16 %v735
      %v1162 = vunpack.c.h.b16 %v735
      %v1163 = vunpack.c.l.b16 %v736
      %v1164 = vunpack.c.h.b16 %v736
      %v1165 = vunpack.c.l.b16 %v737
      %v1166 = vunpack.c.h.b16 %v737
      %v1167 = vunpack.c.l.b16 %v738
      %v1168 = vunpack.c.h.b16 %v738
      %v1169 = vunpack.c.l.b16 %v739
      %v1170 = vunpack.c.h.b16 %v739
      %v1171 = vunpack.c.l.b16 %v740
      %v1172 = vunpack.c.h.b16 %v740
      %v1173 = vunpack.c.l.b16 %v741
      %v1174 = vunpack.c.h.b16 %v741
      %v1175 = vunpack.c.l.b16 %v742
      %v1176 = vunpack.c.h.b16 %v742
      %v1177 = vunpack.c.l.b16 %v743
      %v1178 = vunpack.c.h.b16 %v743
      %v1179 = vunpack.c.l.b16 %v744
      %v1180 = vunpack.c.h.b16 %v744
      %v1181 = vpack.c.b16 %v1119, %v1117
      %v1182 = vpack.c.b16 %v1120, %v1118
      %v1183 = vpack.c.b16 %v1123, %v1121
      %v1184 = vpack.c.b16 %v1124, %v1122
      %v1185 = vpack.c.b16 %v1127, %v1125
      %v1186 = vpack.c.b16 %v1128, %v1126
      %v1187 = vpack.c.b16 %v1131, %v1129
      %v1188 = vpack.c.b16 %v1132, %v1130
      %v1189 = vpack.c.b16 %v1135, %v1133
      %v1190 = vpack.c.b16 %v1136, %v1134
      %v1191 = vpack.c.b16 %v1139, %v1137
      %v1192 = vpack.c.b16 %v1140, %v1138
      %v1193 = vpack.c.b16 %v1143, %v1141
      %v1194 = vpack.c.b16 %v1144, %v1142
      %v1195 = vpack.c.b16 %v1147, %v1145
      %v1196 = vpack.c.b16 %v1148, %v1146
      %v1197 = vpack.c.b16 %v1151, %v1149
      %v1198 = vpack.c.b16 %v1152, %v1150
      %v1199 = vpack.c.b16 %v1155, %v1153
      %v1200 = vpack.c.b16 %v1156, %v1154
      %v1201 = vpack.c.b16 %v1159, %v1157
      %v1202 = vpack.c.b16 %v1160, %v1158
      %v1203 = vpack.c.b16 %v1163, %v1161
      %v1204 = vpack.c.b16 %v1164, %v1162
      %v1205 = vpack.c.b16 %v1167, %v1165
      %v1206 = vpack.c.b16 %v1168, %v1166
      %v1207 = vpack.c.b16 %v1171, %v1169
      %v1208 = vpack.c.b16 %v1172, %v1170
      %v1209 = vpack.c.b16 %v1175, %v1173
      %v1210 = vpack.c.b16 %v1176, %v1174
      %v1211 = vpack.c.b16 %v1179, %v1177
      %v1212 = vpack.c.b16 %v1180, %v1178
      %1245 = vmatpush.bf16.msra.mxu0 %v1195
      %1246 = vmatpush.bf16.msra.mxu0 %v1193
      %1247 = vmatpush.bf16.msra.mxu0 %v1191
      %1248 = vmatpush.bf16.msra.mxu0 %v1189
      %1249 = vmatpush.bf16.msra.mxu0 %v1187
      %1250 = vmatpush.bf16.msra.mxu0 %v1185
      %1251 = vmatpush.bf16.msra.mxu0 %v1183
      %1252 = vmatpush.bf16.msra.mxu0 %v1181
      %1253 = vmatmul.bf16.gmra.mxu0 %v869
      %v1254 = vpop.f32.mrf.mxu0
      %v1255 = vadd.f32 %v852, %v1254
      %v1256 = vpop.f32.mrf.mxu0
      %1257 = vdwg.mxu0
      %1258 = vmatpush.bf16.msra.mxu0 %v1211
      %1259 = vmatpush.bf16.msra.mxu0 %v1209
      %1260 = vmatpush.bf16.msra.mxu0 %v1207
      %1261 = vmatpush.bf16.msra.mxu0 %v1205
      %1262 = vmatpush.bf16.msra.mxu0 %v1203
      %1263 = vmatpush.bf16.msra.mxu0 %v1201
      %1264 = vmatpush.bf16.msra.mxu0 %v1199
      %1265 = vmatpush.bf16.msra.mxu0 %v1197
      %1266 = vmatmul.bf16.gmra.mxu0 %v870
      %v1267 = vpop.f32.mrf.mxu0
      %v1268 = vadd.f32 %v1255, %v1267
      %v1269 = vpop.f32.mrf.mxu0
      %1270 = vdwg.mxu0
      %1271 = vmatpush.bf16.msra.mxu0 %v1196
      %1272 = vmatpush.bf16.msra.mxu0 %v1194
      %1273 = vmatpush.bf16.msra.mxu0 %v1192
      %1274 = vmatpush.bf16.msra.mxu0 %v1190
      %1275 = vmatpush.bf16.msra.mxu0 %v1188
      %1276 = vmatpush.bf16.msra.mxu0 %v1186
      %1277 = vmatpush.bf16.msra.mxu0 %v1184
      %1278 = vmatpush.bf16.msra.mxu0 %v1182
      %1279 = vmatmul.bf16.gmra.mxu0 %v869
      %v1280 = vpop.f32.mrf.mxu0
      %v1281 = vadd.f32 %v853, %v1280
      %v1282 = vpop.f32.mrf.mxu0
      %1283 = vdwg.mxu0
      %1284 = vmatpush.bf16.msra.mxu0 %v1212
      %1285 = vmatpush.bf16.msra.mxu0 %v1210
      %1286 = vmatpush.bf16.msra.mxu0 %v1208
      %1287 = vmatpush.bf16.msra.mxu0 %v1206
      %1288 = vmatpush.bf16.msra.mxu0 %v1204
      %1289 = vmatpush.bf16.msra.mxu0 %v1202
      %1290 = vmatpush.bf16.msra.mxu0 %v1200
      %1291 = vmatpush.bf16.msra.mxu0 %v1198
      %1292 = vmatmul.bf16.gmra.mxu0 %v870
      %v1293 = vpop.f32.mrf.mxu0
      %v1294 = vadd.f32 %v1281, %v1293
      %v1295 = vpop.f32.mrf.mxu0
      %1296 = vdwg.mxu0
      %v1329 = vunpack.c.l.b16 %v745
      %v1330 = vunpack.c.h.b16 %v745
      %v1331 = vunpack.c.l.b16 %v746
      %v1332 = vunpack.c.h.b16 %v746
      %v1333 = vunpack.c.l.b16 %v747
      %v1334 = vunpack.c.h.b16 %v747
      %v1335 = vunpack.c.l.b16 %v748
      %v1336 = vunpack.c.h.b16 %v748
      %v1337 = vunpack.c.l.b16 %v749
      %v1338 = vunpack.c.h.b16 %v749
      %v1339 = vunpack.c.l.b16 %v750
      %v1340 = vunpack.c.h.b16 %v750
      %v1341 = vunpack.c.l.b16 %v751
      %v1342 = vunpack.c.h.b16 %v751
      %v1343 = vunpack.c.l.b16 %v752
      %v1344 = vunpack.c.h.b16 %v752
      %v1345 = vunpack.c.l.b16 %v753
      %v1346 = vunpack.c.h.b16 %v753
      %v1347 = vunpack.c.l.b16 %v754
      %v1348 = vunpack.c.h.b16 %v754
      %v1349 = vunpack.c.l.b16 %v755
      %v1350 = vunpack.c.h.b16 %v755
      %v1351 = vunpack.c.l.b16 %v756
      %v1352 = vunpack.c.h.b16 %v756
      %v1353 = vunpack.c.l.b16 %v757
      %v1354 = vunpack.c.h.b16 %v757
      %v1355 = vunpack.c.l.b16 %v758
      %v1356 = vunpack.c.h.b16 %v758
      %v1357 = vunpack.c.l.b16 %v759
      %v1358 = vunpack.c.h.b16 %v759
      %v1359 = vunpack.c.l.b16 %v760
      %v1360 = vunpack.c.h.b16 %v760
      %v1361 = vunpack.c.l.b16 %v761
      %v1362 = vunpack.c.h.b16 %v761
      %v1363 = vunpack.c.l.b16 %v762
      %v1364 = vunpack.c.h.b16 %v762
      %v1365 = vunpack.c.l.b16 %v763
      %v1366 = vunpack.c.h.b16 %v763
      %v1367 = vunpack.c.l.b16 %v764
      %v1368 = vunpack.c.h.b16 %v764
      %v1369 = vunpack.c.l.b16 %v765
      %v1370 = vunpack.c.h.b16 %v765
      %v1371 = vunpack.c.l.b16 %v766
      %v1372 = vunpack.c.h.b16 %v766
      %v1373 = vunpack.c.l.b16 %v767
      %v1374 = vunpack.c.h.b16 %v767
      %v1375 = vunpack.c.l.b16 %v768
      %v1376 = vunpack.c.h.b16 %v768
      %v1377 = vunpack.c.l.b16 %v769
      %v1378 = vunpack.c.h.b16 %v769
      %v1379 = vunpack.c.l.b16 %v770
      %v1380 = vunpack.c.h.b16 %v770
      %v1381 = vunpack.c.l.b16 %v771
      %v1382 = vunpack.c.h.b16 %v771
      %v1383 = vunpack.c.l.b16 %v772
      %v1384 = vunpack.c.h.b16 %v772
      %v1385 = vunpack.c.l.b16 %v773
      %v1386 = vunpack.c.h.b16 %v773
      %v1387 = vunpack.c.l.b16 %v774
      %v1388 = vunpack.c.h.b16 %v774
      %v1389 = vunpack.c.l.b16 %v775
      %v1390 = vunpack.c.h.b16 %v775
      %v1391 = vunpack.c.l.b16 %v776
      %v1392 = vunpack.c.h.b16 %v776
      %v1393 = vpack.c.b16 %v1331, %v1329
      %v1394 = vpack.c.b16 %v1332, %v1330
      %v1395 = vpack.c.b16 %v1335, %v1333
      %v1396 = vpack.c.b16 %v1336, %v1334
      %v1397 = vpack.c.b16 %v1339, %v1337
      %v1398 = vpack.c.b16 %v1340, %v1338
      %v1399 = vpack.c.b16 %v1343, %v1341
      %v1400 = vpack.c.b16 %v1344, %v1342
      %v1401 = vpack.c.b16 %v1347, %v1345
      %v1402 = vpack.c.b16 %v1348, %v1346
      %v1403 = vpack.c.b16 %v1351, %v1349
      %v1404 = vpack.c.b16 %v1352, %v1350
      %v1405 = vpack.c.b16 %v1355, %v1353
      %v1406 = vpack.c.b16 %v1356, %v1354
      %v1407 = vpack.c.b16 %v1359, %v1357
      %v1408 = vpack.c.b16 %v1360, %v1358
      %v1409 = vpack.c.b16 %v1363, %v1361
      %v1410 = vpack.c.b16 %v1364, %v1362
      %v1411 = vpack.c.b16 %v1367, %v1365
      %v1412 = vpack.c.b16 %v1368, %v1366
      %v1413 = vpack.c.b16 %v1371, %v1369
      %v1414 = vpack.c.b16 %v1372, %v1370
      %v1415 = vpack.c.b16 %v1375, %v1373
      %v1416 = vpack.c.b16 %v1376, %v1374
      %v1417 = vpack.c.b16 %v1379, %v1377
      %v1418 = vpack.c.b16 %v1380, %v1378
      %v1419 = vpack.c.b16 %v1383, %v1381
      %v1420 = vpack.c.b16 %v1384, %v1382
      %v1421 = vpack.c.b16 %v1387, %v1385
      %v1422 = vpack.c.b16 %v1388, %v1386
      %v1423 = vpack.c.b16 %v1391, %v1389
      %v1424 = vpack.c.b16 %v1392, %v1390
      %1457 = vmatpush.bf16.msra.mxu0 %v1407
      %1458 = vmatpush.bf16.msra.mxu0 %v1405
      %1459 = vmatpush.bf16.msra.mxu0 %v1403
      %1460 = vmatpush.bf16.msra.mxu0 %v1401
      %1461 = vmatpush.bf16.msra.mxu0 %v1399
      %1462 = vmatpush.bf16.msra.mxu0 %v1397
      %1463 = vmatpush.bf16.msra.mxu0 %v1395
      %1464 = vmatpush.bf16.msra.mxu0 %v1393
      %1465 = vmatmul.bf16.gmra.mxu0 %v869
      %v1466 = vpop.f32.mrf.mxu0
      %v1467 = vadd.f32 %v854, %v1466
      %v1468 = vpop.f32.mrf.mxu0
      %1469 = vdwg.mxu0
      %1470 = vmatpush.bf16.msra.mxu0 %v1423
      %1471 = vmatpush.bf16.msra.mxu0 %v1421
      %1472 = vmatpush.bf16.msra.mxu0 %v1419
      %1473 = vmatpush.bf16.msra.mxu0 %v1417
      %1474 = vmatpush.bf16.msra.mxu0 %v1415
      %1475 = vmatpush.bf16.msra.mxu0 %v1413
      %1476 = vmatpush.bf16.msra.mxu0 %v1411
      %1477 = vmatpush.bf16.msra.mxu0 %v1409
      %1478 = vmatmul.bf16.gmra.mxu0 %v870
      %v1479 = vpop.f32.mrf.mxu0
      %v1480 = vadd.f32 %v1467, %v1479
      %v1481 = vpop.f32.mrf.mxu0
      %1482 = vdwg.mxu0
      %1483 = vmatpush.bf16.msra.mxu0 %v1408
      %1484 = vmatpush.bf16.msra.mxu0 %v1406
      %1485 = vmatpush.bf16.msra.mxu0 %v1404
      %1486 = vmatpush.bf16.msra.mxu0 %v1402
      %1487 = vmatpush.bf16.msra.mxu0 %v1400
      %1488 = vmatpush.bf16.msra.mxu0 %v1398
      %1489 = vmatpush.bf16.msra.mxu0 %v1396
      %1490 = vmatpush.bf16.msra.mxu0 %v1394
      %1491 = vmatmul.bf16.gmra.mxu0 %v869
      %v1492 = vpop.f32.mrf.mxu0
      %v1493 = vadd.f32 %v855, %v1492
      %v1494 = vpop.f32.mrf.mxu0
      %1495 = vdwg.mxu0
      %1496 = vmatpush.bf16.msra.mxu0 %v1424
      %1497 = vmatpush.bf16.msra.mxu0 %v1422
      %1498 = vmatpush.bf16.msra.mxu0 %v1420
      %1499 = vmatpush.bf16.msra.mxu0 %v1418
      %1500 = vmatpush.bf16.msra.mxu0 %v1416
      %1501 = vmatpush.bf16.msra.mxu0 %v1414
      %1502 = vmatpush.bf16.msra.mxu0 %v1412
      %1503 = vmatpush.bf16.msra.mxu0 %v1410
      %1504 = vmatmul.bf16.gmra.mxu0 %v870
      %v1505 = vpop.f32.mrf.mxu0
      %v1506 = vadd.f32 %v1493, %v1505
      %v1507 = vpop.f32.mrf.mxu0
      %1508 = vdwg.mxu0
      %v1541 = vunpack.c.l.b16 %v777
      %v1542 = vunpack.c.h.b16 %v777
      %v1543 = vunpack.c.l.b16 %v778
      %v1544 = vunpack.c.h.b16 %v778
      %v1545 = vunpack.c.l.b16 %v779
      %v1546 = vunpack.c.h.b16 %v779
      %v1547 = vunpack.c.l.b16 %v780
      %v1548 = vunpack.c.h.b16 %v780
      %v1549 = vunpack.c.l.b16 %v781
      %v1550 = vunpack.c.h.b16 %v781
      %v1551 = vunpack.c.l.b16 %v782
      %v1552 = vunpack.c.h.b16 %v782
      %v1553 = vunpack.c.l.b16 %v783
      %v1554 = vunpack.c.h.b16 %v783
      %v1555 = vunpack.c.l.b16 %v784
      %v1556 = vunpack.c.h.b16 %v784
      %v1557 = vunpack.c.l.b16 %v785
      %v1558 = vunpack.c.h.b16 %v785
      %v1559 = vunpack.c.l.b16 %v786
      %v1560 = vunpack.c.h.b16 %v786
      %v1561 = vunpack.c.l.b16 %v787
      %v1562 = vunpack.c.h.b16 %v787
      %v1563 = vunpack.c.l.b16 %v788
      %v1564 = vunpack.c.h.b16 %v788
      %v1565 = vunpack.c.l.b16 %v789
      %v1566 = vunpack.c.h.b16 %v789
      %v1567 = vunpack.c.l.b16 %v790
      %v1568 = vunpack.c.h.b16 %v790
      %v1569 = vunpack.c.l.b16 %v791
      %v1570 = vunpack.c.h.b16 %v791
      %v1571 = vunpack.c.l.b16 %v792
      %v1572 = vunpack.c.h.b16 %v792
      %v1573 = vunpack.c.l.b16 %v793
      %v1574 = vunpack.c.h.b16 %v793
      %v1575 = vunpack.c.l.b16 %v794
      %v1576 = vunpack.c.h.b16 %v794
      %v1577 = vunpack.c.l.b16 %v795
      %v1578 = vunpack.c.h.b16 %v795
      %v1579 = vunpack.c.l.b16 %v796
      %v1580 = vunpack.c.h.b16 %v796
      %v1581 = vunpack.c.l.b16 %v797
      %v1582 = vunpack.c.h.b16 %v797
      %v1583 = vunpack.c.l.b16 %v798
      %v1584 = vunpack.c.h.b16 %v798
      %v1585 = vunpack.c.l.b16 %v799
      %v1586 = vunpack.c.h.b16 %v799
      %v1587 = vunpack.c.l.b16 %v800
      %v1588 = vunpack.c.h.b16 %v800
      %v1589 = vunpack.c.l.b16 %v801
      %v1590 = vunpack.c.h.b16 %v801
      %v1591 = vunpack.c.l.b16 %v802
      %v1592 = vunpack.c.h.b16 %v802
      %v1593 = vunpack.c.l.b16 %v803
      %v1594 = vunpack.c.h.b16 %v803
      %v1595 = vunpack.c.l.b16 %v804
      %v1596 = vunpack.c.h.b16 %v804
      %v1597 = vunpack.c.l.b16 %v805
      %v1598 = vunpack.c.h.b16 %v805
      %v1599 = vunpack.c.l.b16 %v806
      %v1600 = vunpack.c.h.b16 %v806
      %v1601 = vunpack.c.l.b16 %v807
      %v1602 = vunpack.c.h.b16 %v807
      %v1603 = vunpack.c.l.b16 %v808
      %v1604 = vunpack.c.h.b16 %v808
      %v1605 = vpack.c.b16 %v1543, %v1541
      %v1606 = vpack.c.b16 %v1544, %v1542
      %v1607 = vpack.c.b16 %v1547, %v1545
      %v1608 = vpack.c.b16 %v1548, %v1546
      %v1609 = vpack.c.b16 %v1551, %v1549
      %v1610 = vpack.c.b16 %v1552, %v1550
      %v1611 = vpack.c.b16 %v1555, %v1553
      %v1612 = vpack.c.b16 %v1556, %v1554
      %v1613 = vpack.c.b16 %v1559, %v1557
      %v1614 = vpack.c.b16 %v1560, %v1558
      %v1615 = vpack.c.b16 %v1563, %v1561
      %v1616 = vpack.c.b16 %v1564, %v1562
      %v1617 = vpack.c.b16 %v1567, %v1565
      %v1618 = vpack.c.b16 %v1568, %v1566
      %v1619 = vpack.c.b16 %v1571, %v1569
      %v1620 = vpack.c.b16 %v1572, %v1570
      %v1621 = vpack.c.b16 %v1575, %v1573
      %v1622 = vpack.c.b16 %v1576, %v1574
      %v1623 = vpack.c.b16 %v1579, %v1577
      %v1624 = vpack.c.b16 %v1580, %v1578
      %v1625 = vpack.c.b16 %v1583, %v1581
      %v1626 = vpack.c.b16 %v1584, %v1582
      %v1627 = vpack.c.b16 %v1587, %v1585
      %v1628 = vpack.c.b16 %v1588, %v1586
      %v1629 = vpack.c.b16 %v1591, %v1589
      %v1630 = vpack.c.b16 %v1592, %v1590
      %v1631 = vpack.c.b16 %v1595, %v1593
      %v1632 = vpack.c.b16 %v1596, %v1594
      %v1633 = vpack.c.b16 %v1599, %v1597
      %v1634 = vpack.c.b16 %v1600, %v1598
      %v1635 = vpack.c.b16 %v1603, %v1601
      %v1636 = vpack.c.b16 %v1604, %v1602
      %1669 = vmatpush.bf16.msra.mxu0 %v1619
      %1670 = vmatpush.bf16.msra.mxu0 %v1617
      %1671 = vmatpush.bf16.msra.mxu0 %v1615
      %1672 = vmatpush.bf16.msra.mxu0 %v1613
      %1673 = vmatpush.bf16.msra.mxu0 %v1611
      %1674 = vmatpush.bf16.msra.mxu0 %v1609
      %1675 = vmatpush.bf16.msra.mxu0 %v1607
      %1676 = vmatpush.bf16.msra.mxu0 %v1605
      %1677 = vmatmul.bf16.gmra.mxu0 %v869
      %v1678 = vpop.f32.mrf.mxu0
      %v1679 = vadd.f32 %v856, %v1678
      %v1680 = vpop.f32.mrf.mxu0
      %1681 = vdwg.mxu0
      %1682 = vmatpush.bf16.msra.mxu0 %v1635
      %1683 = vmatpush.bf16.msra.mxu0 %v1633
      %1684 = vmatpush.bf16.msra.mxu0 %v1631
      %1685 = vmatpush.bf16.msra.mxu0 %v1629
      %1686 = vmatpush.bf16.msra.mxu0 %v1627
      %1687 = vmatpush.bf16.msra.mxu0 %v1625
      %1688 = vmatpush.bf16.msra.mxu0 %v1623
      %1689 = vmatpush.bf16.msra.mxu0 %v1621
      %1690 = vmatmul.bf16.gmra.mxu0 %v870
      %v1691 = vpop.f32.mrf.mxu0
      %v1692 = vadd.f32 %v1679, %v1691
      %v1693 = vpop.f32.mrf.mxu0
      %1694 = vdwg.mxu0
      %1695 = vmatpush.bf16.msra.mxu0 %v1620
      %1696 = vmatpush.bf16.msra.mxu0 %v1618
      %1697 = vmatpush.bf16.msra.mxu0 %v1616
      %1698 = vmatpush.bf16.msra.mxu0 %v1614
      %1699 = vmatpush.bf16.msra.mxu0 %v1612
      %1700 = vmatpush.bf16.msra.mxu0 %v1610
      %1701 = vmatpush.bf16.msra.mxu0 %v1608
      %1702 = vmatpush.bf16.msra.mxu0 %v1606
      %1703 = vmatmul.bf16.gmra.mxu0 %v869
      %v1704 = vpop.f32.mrf.mxu0
      %v1705 = vadd.f32 %v857, %v1704
      %v1706 = vpop.f32.mrf.mxu0
      %1707 = vdwg.mxu0
      %1708 = vmatpush.bf16.msra.mxu0 %v1636
      %1709 = vmatpush.bf16.msra.mxu0 %v1634
      %1710 = vmatpush.bf16.msra.mxu0 %v1632
      %1711 = vmatpush.bf16.msra.mxu0 %v1630
      %1712 = vmatpush.bf16.msra.mxu0 %v1628
      %1713 = vmatpush.bf16.msra.mxu0 %v1626
      %1714 = vmatpush.bf16.msra.mxu0 %v1624
      %1715 = vmatpush.bf16.msra.mxu0 %v1622
      %1716 = vmatmul.bf16.gmra.mxu0 %v870
      %v1717 = vpop.f32.mrf.mxu0
      %v1718 = vadd.f32 %v1705, %v1717
      %v1719 = vpop.f32.mrf.mxu0
      %1720 = vdwg.mxu0
      %v1721 = vpack.c.bf16 %v1056, %v1056
      %v1722 = vpack.c.bf16 %v1268, %v1268
      %v1723 = vpack.c.bf16 %v1480, %v1480
      %v1724 = vpack.c.bf16 %v1692, %v1692
      %v1725 = vpack.c.bf16 %v1082, %v1082
      %v1726 = vpack.c.bf16 %v1294, %v1294
      %v1727 = vpack.c.bf16 %v1506, %v1506
      %v1728 = vpack.c.bf16 %v1718, %v1718
      %v1730 = vunpack.c.l.b16 %v1721
      %v1731 = vpack.c.b16 %v1730, %v1730
      %1732 = vrot.lane.b32.xlu0 %v1731, 64
      %v1733 = vpop.permute.xlu0 %1732
      %vm1734 = vcmask 523264
      %v1736 = vsel %vm1734, %v1721, 0
      %v1739 = vsel %vm1734, %v1733, 0
      %1741 = vmatpush.bf16.xpose.msra.mxu0 0
      %1742 = vmatpush.bf16.xpose.msra.mxu0 0
      %1743 = vmatpush.bf16.xpose.msra.mxu0 0
      %1744 = vmatpush.bf16.xpose.msra.mxu0 0
      %1745 = vmatpush.bf16.xpose.msra.mxu0 0
      %1746 = vmatpush.bf16.xpose.msra.mxu0 0
      %1747 = vmatpush.bf16.xpose.msra.mxu0 0
      %1748 = vmatpush.bf16.xpose.msra.mxu0 %v1739
      %1749 = vmatmul.bf16.gmra.mxu0 %v1736
      %v1750 = vpop.f32.mrf.mxu0
      %v1751 = vadd.f32 0.0, %v1750
      %v1752 = vpop.f32.mrf.mxu0
      %1753 = vdwg.mxu0
      %v1755 = vunpack.c.l.b16 %v1722
      %v1756 = vpack.c.b16 %v1755, %v1755
      %1757 = vrot.lane.b32.xlu0 %v1756, 64
      %v1758 = vpop.permute.xlu0 %1757
      %v1760 = vsel %vm1734, %v1722, 0
      %v1763 = vsel %vm1734, %v1758, 0
      %1765 = vmatpush.bf16.xpose.msra.mxu0 0
      %1766 = vmatpush.bf16.xpose.msra.mxu0 0
      %1767 = vmatpush.bf16.xpose.msra.mxu0 0
      %1768 = vmatpush.bf16.xpose.msra.mxu0 0
      %1769 = vmatpush.bf16.xpose.msra.mxu0 0
      %1770 = vmatpush.bf16.xpose.msra.mxu0 0
      %1771 = vmatpush.bf16.xpose.msra.mxu0 0
      %1772 = vmatpush.bf16.xpose.msra.mxu0 %v1763
      %1773 = vmatmul.bf16.gmra.mxu0 %v1760
      %v1774 = vpop.f32.mrf.mxu0
      %v1775 = vadd.f32 0.0, %v1774
      %v1776 = vpop.f32.mrf.mxu0
      %1777 = vdwg.mxu0
      %v1779 = vunpack.c.l.b16 %v1723
      %v1780 = vpack.c.b16 %v1779, %v1779
      %1781 = vrot.lane.b32.xlu0 %v1780, 64
      %v1782 = vpop.permute.xlu0 %1781
      %v1784 = vsel %vm1734, %v1723, 0
      %v1787 = vsel %vm1734, %v1782, 0
      %1789 = vmatpush.bf16.xpose.msra.mxu0 0
      %1790 = vmatpush.bf16.xpose.msra.mxu0 0
      %1791 = vmatpush.bf16.xpose.msra.mxu0 0
      %1792 = vmatpush.bf16.xpose.msra.mxu0 0
      %1793 = vmatpush.bf16.xpose.msra.mxu0 0
      %1794 = vmatpush.bf16.xpose.msra.mxu0 0
      %1795 = vmatpush.bf16.xpose.msra.mxu0 0
      %1796 = vmatpush.bf16.xpose.msra.mxu0 %v1787
      %1797 = vmatmul.bf16.gmra.mxu0 %v1784
      %v1798 = vpop.f32.mrf.mxu0
      %v1799 = vadd.f32 0.0, %v1798
      %v1800 = vpop.f32.mrf.mxu0
      %1801 = vdwg.mxu0
      %v1803 = vunpack.c.l.b16 %v1724
      %v1804 = vpack.c.b16 %v1803, %v1803
      %1805 = vrot.lane.b32.xlu0 %v1804, 64
      %v1806 = vpop.permute.xlu0 %1805
      %v1808 = vsel %vm1734, %v1724, 0
      %v1811 = vsel %vm1734, %v1806, 0
      %1813 = vmatpush.bf16.xpose.msra.mxu0 0
      %1814 = vmatpush.bf16.xpose.msra.mxu0 0
      %1815 = vmatpush.bf16.xpose.msra.mxu0 0
      %1816 = vmatpush.bf16.xpose.msra.mxu0 0
      %1817 = vmatpush.bf16.xpose.msra.mxu0 0
      %1818 = vmatpush.bf16.xpose.msra.mxu0 0
      %1819 = vmatpush.bf16.xpose.msra.mxu0 0
      %1820 = vmatpush.bf16.xpose.msra.mxu0 %v1811
      %1821 = vmatmul.bf16.gmra.mxu0 %v1808
      %v1822 = vpop.f32.mrf.mxu0
      %v1823 = vadd.f32 0.0, %v1822
      %v1824 = vpop.f32.mrf.mxu0
      %1825 = vdwg.mxu0
      %vm1826 = vcmask 64512
      %v1827 = vsel %vm1826, %v1751, -inf
      %1828 = vmax.xlane.f32.xlu0 %v1827
      %v1829 = vpop.xlane.xlu0 %1828
      %v1830 = vsel %vm1826, %v1775, -inf
      %1831 = vmax.xlane.f32.xlu0 %v1830
      %v1832 = vpop.xlane.xlu0 %1831
      %v1833 = vsel %vm1826, %v1799, -inf
      %1834 = vmax.xlane.f32.xlu0 %v1833
      %v1835 = vpop.xlane.xlu0 %1834
      %v1836 = vsel %vm1826, %v1823, -inf
      %1837 = vmax.xlane.f32.xlu0 %v1836
      %v1838 = vpop.xlane.xlu0 %1837
      %v1839 = vsub.f32 %v1751, %v1829
      %v1840 = vsub.f32 %v1775, %v1832
      %v1841 = vsub.f32 %v1799, %v1835
      %v1842 = vsub.f32 %v1823, %v1838
      %v1843 = vmul.f32 %v1839, 1.442695
      %v1844 = vpow.pop %v1843
      %v1845 = vmul.f32 %v1840, 1.442695
      %v1846 = vpow.pop %v1845
      %v1847 = vmul.f32 %v1841, 1.442695
      %v1848 = vpow.pop %v1847
      %v1849 = vmul.f32 %v1842, 1.442695
      %v1850 = vpow.pop %v1849
      %v1851 = vsel %vm1826, %v1844, 0.0
      %1852 = vadd.xlane.f32.xlu0 %v1851
      %v1853 = vpop.xlane.xlu0 %1852
      %v1854 = vsel %vm1826, %v1846, 0.0
      %1855 = vadd.xlane.f32.xlu0 %v1854
      %v1856 = vpop.xlane.xlu0 %1855
      %v1857 = vsel %vm1826, %v1848, 0.0
      %1858 = vadd.xlane.f32.xlu0 %v1857
      %v1859 = vpop.xlane.xlu0 %1858
      %v1860 = vsel %vm1826, %v1850, 0.0
      %1861 = vadd.xlane.f32.xlu0 %v1860
      %v1862 = vpop.xlane.xlu0 %1861
      %v1863 = vrcp.pop %v1853
      %v1864 = vrcp.pop %v1856
      %v1865 = vrcp.pop %v1859
      %v1866 = vrcp.pop %v1862
      %v1867 = vmul.f32 %v1844, %v1863
      %v1868 = vmul.f32 %v1846, %v1864
      %v1869 = vmul.f32 %v1848, %v1865
      %v1870 = vmul.f32 %v1850, %v1866
      %v1871 = vpack.c.bf16 %v1867, %v1867
      %v1872 = vpack.c.bf16 %v1868, %v1868
      %v1873 = vpack.c.bf16 %v1869, %v1869
      %v1874 = vpack.c.bf16 %v1870, %v1870
      %v1876 = vsel %vm1826, %v1871, 0
      %vm1878 = vcmask 1043456
      %v1880 = vsel %vm1878, %v1725, 0
      %1882 = vmatpush.bf16.msra.mxu0 0
      %1883 = vmatpush.bf16.msra.mxu0 0
      %1884 = vmatpush.bf16.msra.mxu0 0
      %1885 = vmatpush.bf16.msra.mxu0 0
      %1886 = vmatpush.bf16.msra.mxu0 0
      %1887 = vmatpush.bf16.msra.mxu0 0
      %1888 = vmatpush.bf16.msra.mxu0 0
      %1889 = vmatpush.bf16.msra.mxu0 %v1880
      %1890 = vmatmul.bf16.gmra.mxu0 %v1876
      %v1891 = vpop.f32.mrf.mxu0
      %v1892 = vadd.f32 0.0, %v1891
      %v1893 = vpop.f32.mrf.mxu0
      %1894 = vdwg.mxu0
      %v1896 = vsel %vm1826, %v1872, 0
      %v1899 = vsel %vm1878, %v1726, 0
      %1901 = vmatpush.bf16.msra.mxu0 0
      %1902 = vmatpush.bf16.msra.mxu0 0
      %1903 = vmatpush.bf16.msra.mxu0 0
      %1904 = vmatpush.bf16.msra.mxu0 0
      %1905 = vmatpush.bf16.msra.mxu0 0
      %1906 = vmatpush.bf16.msra.mxu0 0
      %1907 = vmatpush.bf16.msra.mxu0 0
      %1908 = vmatpush.bf16.msra.mxu0 %v1899
      %1909 = vmatmul.bf16.gmra.mxu0 %v1896
      %v1910 = vpop.f32.mrf.mxu0
      %v1911 = vadd.f32 0.0, %v1910
      %v1912 = vpop.f32.mrf.mxu0
      %1913 = vdwg.mxu0
      %v1915 = vsel %vm1826, %v1873, 0
      %v1918 = vsel %vm1878, %v1727, 0
      %1920 = vmatpush.bf16.msra.mxu0 0
      %1921 = vmatpush.bf16.msra.mxu0 0
      %1922 = vmatpush.bf16.msra.mxu0 0
      %1923 = vmatpush.bf16.msra.mxu0 0
      %1924 = vmatpush.bf16.msra.mxu0 0
      %1925 = vmatpush.bf16.msra.mxu0 0
      %1926 = vmatpush.bf16.msra.mxu0 0
      %1927 = vmatpush.bf16.msra.mxu0 %v1918
      %1928 = vmatmul.bf16.gmra.mxu0 %v1915
      %v1929 = vpop.f32.mrf.mxu0
      %v1930 = vadd.f32 0.0, %v1929
      %v1931 = vpop.f32.mrf.mxu0
      %1932 = vdwg.mxu0
      %v1934 = vsel %vm1826, %v1874, 0
      %v1937 = vsel %vm1878, %v1728, 0
      %1939 = vmatpush.bf16.msra.mxu0 0
      %1940 = vmatpush.bf16.msra.mxu0 0
      %1941 = vmatpush.bf16.msra.mxu0 0
      %1942 = vmatpush.bf16.msra.mxu0 0
      %1943 = vmatpush.bf16.msra.mxu0 0
      %1944 = vmatpush.bf16.msra.mxu0 0
      %1945 = vmatpush.bf16.msra.mxu0 0
      %1946 = vmatpush.bf16.msra.mxu0 %v1937
      %1947 = vmatmul.bf16.gmra.mxu0 %v1934
      %v1948 = vpop.f32.mrf.mxu0
      %v1949 = vadd.f32 0.0, %v1948
      %v1950 = vpop.f32.mrf.mxu0
      %1951 = vdwg.mxu0
      %v1952 = vpack.c.bf16 %v1892, %v1892
      %v1953 = vpack.c.bf16 %v1911, %v1911
      %v1954 = vpack.c.bf16 %v1930, %v1930
      %v1955 = vpack.c.bf16 %v1949, %v1949
      %v1964 = vunpack.c.l.b16 %v813
      %v1965 = vunpack.c.h.b16 %v813
      %v1966 = vunpack.c.l.b16 %v814
      %v1967 = vunpack.c.h.b16 %v814
      %v1968 = vunpack.c.l.b16 %v815
      %v1969 = vunpack.c.h.b16 %v815
      %v1970 = vunpack.c.l.b16 %v816
      %v1971 = vunpack.c.h.b16 %v816
      %v1972 = vunpack.c.l.b16 %v817
      %v1973 = vunpack.c.h.b16 %v817
      %v1974 = vunpack.c.l.b16 %v818
      %v1975 = vunpack.c.h.b16 %v818
      %v1976 = vunpack.c.l.b16 %v819
      %v1977 = vunpack.c.h.b16 %v819
      %v1978 = vunpack.c.l.b16 %v820
      %v1979 = vunpack.c.h.b16 %v820
      %v1980 = vpack.c.b16 %v1966, %v1964
      %v1981 = vpack.c.b16 %v1967, %v1965
      %v1982 = vpack.c.b16 %v1970, %v1968
      %v1983 = vpack.c.b16 %v1971, %v1969
      %v1984 = vpack.c.b16 %v1974, %v1972
      %v1985 = vpack.c.b16 %v1975, %v1973
      %v1986 = vpack.c.b16 %v1978, %v1976
      %v1987 = vpack.c.b16 %v1979, %v1977
      %v1997 = vsel %vm1734, %v1952, 0
      %1999 = vmatpush.bf16.msra.mxu0 0
      %2000 = vmatpush.bf16.msra.mxu0 0
      %2001 = vmatpush.bf16.msra.mxu0 0
      %2002 = vmatpush.bf16.msra.mxu0 0
      %2003 = vmatpush.bf16.msra.mxu0 %v1986
      %2004 = vmatpush.bf16.msra.mxu0 %v1984
      %2005 = vmatpush.bf16.msra.mxu0 %v1982
      %2006 = vmatpush.bf16.msra.mxu0 %v1980
      %2007 = vmatmul.bf16.gmra.mxu0 %v1997
      %v2008 = vpop.f32.mrf.mxu0
      %v2009 = vadd.f32 0.0, %v2008
      %v2010 = vpop.f32.mrf.mxu0
      %2011 = vdwg.mxu0
      %2012 = vmatpush.bf16.msra.mxu0 0
      %2013 = vmatpush.bf16.msra.mxu0 0
      %2014 = vmatpush.bf16.msra.mxu0 0
      %2015 = vmatpush.bf16.msra.mxu0 0
      %2016 = vmatpush.bf16.msra.mxu0 %v1987
      %2017 = vmatpush.bf16.msra.mxu0 %v1985
      %2018 = vmatpush.bf16.msra.mxu0 %v1983
      %2019 = vmatpush.bf16.msra.mxu0 %v1981
      %2020 = vmatmul.bf16.gmra.mxu0 %v1997
      %v2021 = vpop.f32.mrf.mxu0
      %v2022 = vadd.f32 0.0, %v2021
      %v2023 = vpop.f32.mrf.mxu0
      %2024 = vdwg.mxu0
      %v2033 = vunpack.c.l.b16 %v821
      %v2034 = vunpack.c.h.b16 %v821
      %v2035 = vunpack.c.l.b16 %v822
      %v2036 = vunpack.c.h.b16 %v822
      %v2037 = vunpack.c.l.b16 %v823
      %v2038 = vunpack.c.h.b16 %v823
      %v2039 = vunpack.c.l.b16 %v824
      %v2040 = vunpack.c.h.b16 %v824
      %v2041 = vunpack.c.l.b16 %v825
      %v2042 = vunpack.c.h.b16 %v825
      %v2043 = vunpack.c.l.b16 %v826
      %v2044 = vunpack.c.h.b16 %v826
      %v2045 = vunpack.c.l.b16 %v827
      %v2046 = vunpack.c.h.b16 %v827
      %v2047 = vunpack.c.l.b16 %v828
      %v2048 = vunpack.c.h.b16 %v828
      %v2049 = vpack.c.b16 %v2035, %v2033
      %v2050 = vpack.c.b16 %v2036, %v2034
      %v2051 = vpack.c.b16 %v2039, %v2037
      %v2052 = vpack.c.b16 %v2040, %v2038
      %v2053 = vpack.c.b16 %v2043, %v2041
      %v2054 = vpack.c.b16 %v2044, %v2042
      %v2055 = vpack.c.b16 %v2047, %v2045
      %v2056 = vpack.c.b16 %v2048, %v2046
      %v2066 = vsel %vm1734, %v1953, 0
      %2068 = vmatpush.bf16.msra.mxu0 0
      %2069 = vmatpush.bf16.msra.mxu0 0
      %2070 = vmatpush.bf16.msra.mxu0 0
      %2071 = vmatpush.bf16.msra.mxu0 0
      %2072 = vmatpush.bf16.msra.mxu0 %v2055
      %2073 = vmatpush.bf16.msra.mxu0 %v2053
      %2074 = vmatpush.bf16.msra.mxu0 %v2051
      %2075 = vmatpush.bf16.msra.mxu0 %v2049
      %2076 = vmatmul.bf16.gmra.mxu0 %v2066
      %v2077 = vpop.f32.mrf.mxu0
      %v2078 = vadd.f32 0.0, %v2077
      %v2079 = vpop.f32.mrf.mxu0
      %2080 = vdwg.mxu0
      %2081 = vmatpush.bf16.msra.mxu0 0
      %2082 = vmatpush.bf16.msra.mxu0 0
      %2083 = vmatpush.bf16.msra.mxu0 0
      %2084 = vmatpush.bf16.msra.mxu0 0
      %2085 = vmatpush.bf16.msra.mxu0 %v2056
      %2086 = vmatpush.bf16.msra.mxu0 %v2054
      %2087 = vmatpush.bf16.msra.mxu0 %v2052
      %2088 = vmatpush.bf16.msra.mxu0 %v2050
      %2089 = vmatmul.bf16.gmra.mxu0 %v2066
      %v2090 = vpop.f32.mrf.mxu0
      %v2091 = vadd.f32 0.0, %v2090
      %v2092 = vpop.f32.mrf.mxu0
      %2093 = vdwg.mxu0
      %v2102 = vunpack.c.l.b16 %v829
      %v2103 = vunpack.c.h.b16 %v829
      %v2104 = vunpack.c.l.b16 %v830
      %v2105 = vunpack.c.h.b16 %v830
      %v2106 = vunpack.c.l.b16 %v831
      %v2107 = vunpack.c.h.b16 %v831
      %v2108 = vunpack.c.l.b16 %v832
      %v2109 = vunpack.c.h.b16 %v832
      %v2110 = vunpack.c.l.b16 %v833
      %v2111 = vunpack.c.h.b16 %v833
      %v2112 = vunpack.c.l.b16 %v834
      %v2113 = vunpack.c.h.b16 %v834
      %v2114 = vunpack.c.l.b16 %v835
      %v2115 = vunpack.c.h.b16 %v835
      %v2116 = vunpack.c.l.b16 %v836
      %v2117 = vunpack.c.h.b16 %v836
      %v2118 = vpack.c.b16 %v2104, %v2102
      %v2119 = vpack.c.b16 %v2105, %v2103
      %v2120 = vpack.c.b16 %v2108, %v2106
      %v2121 = vpack.c.b16 %v2109, %v2107
      %v2122 = vpack.c.b16 %v2112, %v2110
      %v2123 = vpack.c.b16 %v2113, %v2111
      %v2124 = vpack.c.b16 %v2116, %v2114
      %v2125 = vpack.c.b16 %v2117, %v2115
      %v2135 = vsel %vm1734, %v1954, 0
      %2137 = vmatpush.bf16.msra.mxu0 0
      %2138 = vmatpush.bf16.msra.mxu0 0
      %2139 = vmatpush.bf16.msra.mxu0 0
      %2140 = vmatpush.bf16.msra.mxu0 0
      %2141 = vmatpush.bf16.msra.mxu0 %v2124
      %2142 = vmatpush.bf16.msra.mxu0 %v2122
      %2143 = vmatpush.bf16.msra.mxu0 %v2120
      %2144 = vmatpush.bf16.msra.mxu0 %v2118
      %2145 = vmatmul.bf16.gmra.mxu0 %v2135
      %v2146 = vpop.f32.mrf.mxu0
      %v2147 = vadd.f32 0.0, %v2146
      %v2148 = vpop.f32.mrf.mxu0
      %2149 = vdwg.mxu0
      %2150 = vmatpush.bf16.msra.mxu0 0
      %2151 = vmatpush.bf16.msra.mxu0 0
      %2152 = vmatpush.bf16.msra.mxu0 0
      %2153 = vmatpush.bf16.msra.mxu0 0
      %2154 = vmatpush.bf16.msra.mxu0 %v2125
      %2155 = vmatpush.bf16.msra.mxu0 %v2123
      %2156 = vmatpush.bf16.msra.mxu0 %v2121
      %2157 = vmatpush.bf16.msra.mxu0 %v2119
      %2158 = vmatmul.bf16.gmra.mxu0 %v2135
      %v2159 = vpop.f32.mrf.mxu0
      %v2160 = vadd.f32 0.0, %v2159
      %v2161 = vpop.f32.mrf.mxu0
      %2162 = vdwg.mxu0
      %v2171 = vunpack.c.l.b16 %v837
      %v2172 = vunpack.c.h.b16 %v837
      %v2173 = vunpack.c.l.b16 %v838
      %v2174 = vunpack.c.h.b16 %v838
      %v2175 = vunpack.c.l.b16 %v839
      %v2176 = vunpack.c.h.b16 %v839
      %v2177 = vunpack.c.l.b16 %v840
      %v2178 = vunpack.c.h.b16 %v840
      %v2179 = vunpack.c.l.b16 %v841
      %v2180 = vunpack.c.h.b16 %v841
      %v2181 = vunpack.c.l.b16 %v842
      %v2182 = vunpack.c.h.b16 %v842
      %v2183 = vunpack.c.l.b16 %v843
      %v2184 = vunpack.c.h.b16 %v843
      %v2185 = vunpack.c.l.b16 %v844
      %v2186 = vunpack.c.h.b16 %v844
      %v2187 = vpack.c.b16 %v2173, %v2171
      %v2188 = vpack.c.b16 %v2174, %v2172
      %v2189 = vpack.c.b16 %v2177, %v2175
      %v2190 = vpack.c.b16 %v2178, %v2176
      %v2191 = vpack.c.b16 %v2181, %v2179
      %v2192 = vpack.c.b16 %v2182, %v2180
      %v2193 = vpack.c.b16 %v2185, %v2183
      %v2194 = vpack.c.b16 %v2186, %v2184
      %v2204 = vsel %vm1734, %v1955, 0
      %2206 = vmatpush.bf16.msra.mxu0 0
      %2207 = vmatpush.bf16.msra.mxu0 0
      %2208 = vmatpush.bf16.msra.mxu0 0
      %2209 = vmatpush.bf16.msra.mxu0 0
      %2210 = vmatpush.bf16.msra.mxu0 %v2193
      %2211 = vmatpush.bf16.msra.mxu0 %v2191
      %2212 = vmatpush.bf16.msra.mxu0 %v2189
      %2213 = vmatpush.bf16.msra.mxu0 %v2187
      %2214 = vmatmul.bf16.gmra.mxu0 %v2204
      %v2215 = vpop.f32.mrf.mxu0
      %v2216 = vadd.f32 0.0, %v2215
      %v2217 = vpop.f32.mrf.mxu0
      %2218 = vdwg.mxu0
      %2219 = vmatpush.bf16.msra.mxu0 0
      %2220 = vmatpush.bf16.msra.mxu0 0
      %2221 = vmatpush.bf16.msra.mxu0 0
      %2222 = vmatpush.bf16.msra.mxu0 0
      %2223 = vmatpush.bf16.msra.mxu0 %v2194
      %2224 = vmatpush.bf16.msra.mxu0 %v2192
      %2225 = vmatpush.bf16.msra.mxu0 %v2190
      %2226 = vmatpush.bf16.msra.mxu0 %v2188
      %2227 = vmatmul.bf16.gmra.mxu0 %v2204
      %v2228 = vpop.f32.mrf.mxu0
      %v2229 = vadd.f32 0.0, %v2228
      %v2230 = vpop.f32.mrf.mxu0
      %2231 = vdwg.mxu0
      %v2232 = vadd.f32 %v2009, %v2078
      %v2233 = vadd.f32 %v2232, %v2147
      %v2234 = vadd.f32 %v2233, %v2216
      %v2235 = vadd.f32 %v2022, %v2091
      %v2236 = vadd.f32 %v2235, %v2160
      %v2237 = vadd.f32 %v2236, %v2229
      %v2239 = vperm.slane %v845, 0
      %v2240 = vperm.slane %v845, 1
      %v2243 = vadd.f32 %v2234, %v2239
      %v2244 = vadd.f32 %v2237, %v2240
      %v2245 = vadd.f32 %v678, %v2243
      %v2246 = vadd.f32 %v679, %v2244
      %v2247 = vadd.f32 %v2245, %v2246
      %2248 = vadd.xlane.f32.xlu0 %v2247
      %v2249 = vpop.xlane.xlu0 %2248
      %v2250 = vrcp.pop 256.0
      %v2251 = vmul.f32 256.0, %v2250
      %v2252 = vsub.f32 1.0, %v2251
      %v2253 = vmul.f32 %v2250, %v2252
      %v2254 = vadd.f32 %v2250, %v2253
      %vm2255 = vweird.f32 %v2250
      %v2256 = vsel %vm2255, %v2250, %v2254
      %v2257 = vmul.f32 %v2249, %v2256
      %v2258 = vsub.f32 %v2245, %v2257
      %v2259 = vsub.f32 %v2246, %v2257
      %v2260 = vmul.f32 %v2258, %v2258
      %v2261 = vmul.f32 %v2259, %v2259
      %v2262 = vadd.f32 %v2260, %v2261
      %2263 = vadd.xlane.f32.xlu0 %v2262
      %v2264 = vpop.xlane.xlu0 %2263
      %v2265 = vmul.f32 %v2264, %v2256
      %v2266 = vadd.f32 %v2265, 1e-05
      %v2267 = vrsqrt.pop %v2266
      %v2268 = vmul.f32 %v2267, %v2266
      %v2269 = vmul.f32 %v2268, %v2267
      %v2270 = vmul.f32 0.5, %v2269
      %v2271 = vsub.f32 1.5, %v2270
      %v2272 = vmul.f32 %v2267, %v2271
      %vm2273 = vweird.f32 %v2266
      %vm2274 = vweird.f32 %v2267
      %vm2275 = vmor %vm2273, %vm2274
      %v2276 = vsel %vm2275, %v2267, %v2272
      %v2277 = vmul.f32 %v2258, %v2276
      %v2278 = vmul.f32 %v2259, %v2276
      %v2279 = vld [vmem:[%s633] sm:$0x3]
      %v2281 = vperm.slane %v2279, 0
      %v2282 = vperm.slane %v2279, 1
      %v2285 = vmul.f32 %v2277, %v2281
      %v2286 = vmul.f32 %v2278, %v2282
      %v2287 = vld [vmem:[%s637] sm:$0x3]
      %v2289 = vperm.slane %v2287, 0
      %v2290 = vperm.slane %v2287, 1
      %v2293 = vadd.f32 %v2285, %v2289
      %v2294 = vadd.f32 %v2286, %v2290
      %v2295 = vpack.c.bf16 %v2293, %v2293
      %v2296 = vpack.c.bf16 %v2294, %v2294
      %v2297 = vld [vmem:[%s642] sm:$0xff]
      %v2298 = vld [vmem:[%s642 + $0x8] sm:$0xff]
      %v2299 = vld [vmem:[%s642 + $0x10] sm:$0xff]
      %v2300 = vld [vmem:[%s642 + $0x18] sm:$0xff]
      %v2301 = vld [vmem:[%s642 + $0x20] sm:$0xff]
      %v2302 = vld [vmem:[%s642 + $0x28] sm:$0xff]
      %v2303 = vld [vmem:[%s642 + $0x30] sm:$0xff]
      %v2304 = vld [vmem:[%s642 + $0x38] sm:$0xff]
      %v2305 = vld [vmem:[%s642 + $0x40] sm:$0xff]
      %v2306 = vld [vmem:[%s642 + $0x48] sm:$0xff]
      %v2307 = vld [vmem:[%s642 + $0x50] sm:$0xff]
      %v2308 = vld [vmem:[%s642 + $0x58] sm:$0xff]
      %v2309 = vld [vmem:[%s642 + $0x60] sm:$0xff]
      %v2310 = vld [vmem:[%s642 + $0x68] sm:$0xff]
      %v2311 = vld [vmem:[%s642 + $0x70] sm:$0xff]
      %v2312 = vld [vmem:[%s642 + $0x78] sm:$0xff]
      %v2313 = vld [vmem:[%s642 + $0x80] sm:$0xff]
      %v2314 = vld [vmem:[%s642 + $0x88] sm:$0xff]
      %v2315 = vld [vmem:[%s642 + $0x90] sm:$0xff]
      %v2316 = vld [vmem:[%s642 + $0x98] sm:$0xff]
      %v2317 = vld [vmem:[%s642 + $0xa0] sm:$0xff]
      %v2318 = vld [vmem:[%s642 + $0xa8] sm:$0xff]
      %v2319 = vld [vmem:[%s642 + $0xb0] sm:$0xff]
      %v2320 = vld [vmem:[%s642 + $0xb8] sm:$0xff]
      %v2321 = vld [vmem:[%s642 + $0xc0] sm:$0xff]
      %v2322 = vld [vmem:[%s642 + $0xc8] sm:$0xff]
      %v2323 = vld [vmem:[%s642 + $0xd0] sm:$0xff]
      %v2324 = vld [vmem:[%s642 + $0xd8] sm:$0xff]
      %v2325 = vld [vmem:[%s642 + $0xe0] sm:$0xff]
      %v2326 = vld [vmem:[%s642 + $0xe8] sm:$0xff]
      %v2327 = vld [vmem:[%s642 + $0xf0] sm:$0xff]
      %v2328 = vld [vmem:[%s642 + $0xf8] sm:$0xff]
      %v2329 = vld [vmem:[%s646] sm:$0x3]
      %v2331 = vperm.slane %v2329, 0
      %v2332 = vperm.slane %v2329, 1
      %v2367 = vunpack.c.l.b16 %v2297
      %v2368 = vunpack.c.h.b16 %v2297
      %v2369 = vunpack.c.l.b16 %v2298
      %v2370 = vunpack.c.h.b16 %v2298
      %v2371 = vunpack.c.l.b16 %v2299
      %v2372 = vunpack.c.h.b16 %v2299
      %v2373 = vunpack.c.l.b16 %v2300
      %v2374 = vunpack.c.h.b16 %v2300
      %v2375 = vunpack.c.l.b16 %v2301
      %v2376 = vunpack.c.h.b16 %v2301
      %v2377 = vunpack.c.l.b16 %v2302
      %v2378 = vunpack.c.h.b16 %v2302
      %v2379 = vunpack.c.l.b16 %v2303
      %v2380 = vunpack.c.h.b16 %v2303
      %v2381 = vunpack.c.l.b16 %v2304
      %v2382 = vunpack.c.h.b16 %v2304
      %v2383 = vunpack.c.l.b16 %v2305
      %v2384 = vunpack.c.h.b16 %v2305
      %v2385 = vunpack.c.l.b16 %v2306
      %v2386 = vunpack.c.h.b16 %v2306
      %v2387 = vunpack.c.l.b16 %v2307
      %v2388 = vunpack.c.h.b16 %v2307
      %v2389 = vunpack.c.l.b16 %v2308
      %v2390 = vunpack.c.h.b16 %v2308
      %v2391 = vunpack.c.l.b16 %v2309
      %v2392 = vunpack.c.h.b16 %v2309
      %v2393 = vunpack.c.l.b16 %v2310
      %v2394 = vunpack.c.h.b16 %v2310
      %v2395 = vunpack.c.l.b16 %v2311
      %v2396 = vunpack.c.h.b16 %v2311
      %v2397 = vunpack.c.l.b16 %v2312
      %v2398 = vunpack.c.h.b16 %v2312
      %v2399 = vunpack.c.l.b16 %v2313
      %v2400 = vunpack.c.h.b16 %v2313
      %v2401 = vunpack.c.l.b16 %v2314
      %v2402 = vunpack.c.h.b16 %v2314
      %v2403 = vunpack.c.l.b16 %v2315
      %v2404 = vunpack.c.h.b16 %v2315
      %v2405 = vunpack.c.l.b16 %v2316
      %v2406 = vunpack.c.h.b16 %v2316
      %v2407 = vunpack.c.l.b16 %v2317
      %v2408 = vunpack.c.h.b16 %v2317
      %v2409 = vunpack.c.l.b16 %v2318
      %v2410 = vunpack.c.h.b16 %v2318
      %v2411 = vunpack.c.l.b16 %v2319
      %v2412 = vunpack.c.h.b16 %v2319
      %v2413 = vunpack.c.l.b16 %v2320
      %v2414 = vunpack.c.h.b16 %v2320
      %v2415 = vunpack.c.l.b16 %v2321
      %v2416 = vunpack.c.h.b16 %v2321
      %v2417 = vunpack.c.l.b16 %v2322
      %v2418 = vunpack.c.h.b16 %v2322
      %v2419 = vunpack.c.l.b16 %v2323
      %v2420 = vunpack.c.h.b16 %v2323
      %v2421 = vunpack.c.l.b16 %v2324
      %v2422 = vunpack.c.h.b16 %v2324
      %v2423 = vunpack.c.l.b16 %v2325
      %v2424 = vunpack.c.h.b16 %v2325
      %v2425 = vunpack.c.l.b16 %v2326
      %v2426 = vunpack.c.h.b16 %v2326
      %v2427 = vunpack.c.l.b16 %v2327
      %v2428 = vunpack.c.h.b16 %v2327
      %v2429 = vunpack.c.l.b16 %v2328
      %v2430 = vunpack.c.h.b16 %v2328
      %v2431 = vpack.c.b16 %v2369, %v2367
      %v2432 = vpack.c.b16 %v2370, %v2368
      %v2433 = vpack.c.b16 %v2373, %v2371
      %v2434 = vpack.c.b16 %v2374, %v2372
      %v2435 = vpack.c.b16 %v2377, %v2375
      %v2436 = vpack.c.b16 %v2378, %v2376
      %v2437 = vpack.c.b16 %v2381, %v2379
      %v2438 = vpack.c.b16 %v2382, %v2380
      %v2439 = vpack.c.b16 %v2385, %v2383
      %v2440 = vpack.c.b16 %v2386, %v2384
      %v2441 = vpack.c.b16 %v2389, %v2387
      %v2442 = vpack.c.b16 %v2390, %v2388
      %v2443 = vpack.c.b16 %v2393, %v2391
      %v2444 = vpack.c.b16 %v2394, %v2392
      %v2445 = vpack.c.b16 %v2397, %v2395
      %v2446 = vpack.c.b16 %v2398, %v2396
      %v2447 = vpack.c.b16 %v2401, %v2399
      %v2448 = vpack.c.b16 %v2402, %v2400
      %v2449 = vpack.c.b16 %v2405, %v2403
      %v2450 = vpack.c.b16 %v2406, %v2404
      %v2451 = vpack.c.b16 %v2409, %v2407
      %v2452 = vpack.c.b16 %v2410, %v2408
      %v2453 = vpack.c.b16 %v2413, %v2411
      %v2454 = vpack.c.b16 %v2414, %v2412
      %v2455 = vpack.c.b16 %v2417, %v2415
      %v2456 = vpack.c.b16 %v2418, %v2416
      %v2457 = vpack.c.b16 %v2421, %v2419
      %v2458 = vpack.c.b16 %v2422, %v2420
      %v2459 = vpack.c.b16 %v2425, %v2423
      %v2460 = vpack.c.b16 %v2426, %v2424
      %v2461 = vpack.c.b16 %v2429, %v2427
      %v2462 = vpack.c.b16 %v2430, %v2428
      %2495 = vmatpush.bf16.msra.mxu0 %v2445
      %2496 = vmatpush.bf16.msra.mxu0 %v2443
      %2497 = vmatpush.bf16.msra.mxu0 %v2441
      %2498 = vmatpush.bf16.msra.mxu0 %v2439
      %2499 = vmatpush.bf16.msra.mxu0 %v2437
      %2500 = vmatpush.bf16.msra.mxu0 %v2435
      %2501 = vmatpush.bf16.msra.mxu0 %v2433
      %2502 = vmatpush.bf16.msra.mxu0 %v2431
      %2503 = vmatmul.bf16.gmra.mxu0 %v2295
      %v2504 = vpop.f32.mrf.mxu0
      %v2505 = vadd.f32 %v2331, %v2504
      %v2506 = vpop.f32.mrf.mxu0
      %2507 = vdwg.mxu0
      %2508 = vmatpush.bf16.msra.mxu0 %v2461
      %2509 = vmatpush.bf16.msra.mxu0 %v2459
      %2510 = vmatpush.bf16.msra.mxu0 %v2457
      %2511 = vmatpush.bf16.msra.mxu0 %v2455
      %2512 = vmatpush.bf16.msra.mxu0 %v2453
      %2513 = vmatpush.bf16.msra.mxu0 %v2451
      %2514 = vmatpush.bf16.msra.mxu0 %v2449
      %2515 = vmatpush.bf16.msra.mxu0 %v2447
      %2516 = vmatmul.bf16.gmra.mxu0 %v2296
      %v2517 = vpop.f32.mrf.mxu0
      %v2518 = vadd.f32 %v2505, %v2517
      %v2519 = vpop.f32.mrf.mxu0
      %2520 = vdwg.mxu0
      %2521 = vmatpush.bf16.msra.mxu0 %v2446
      %2522 = vmatpush.bf16.msra.mxu0 %v2444
      %2523 = vmatpush.bf16.msra.mxu0 %v2442
      %2524 = vmatpush.bf16.msra.mxu0 %v2440
      %2525 = vmatpush.bf16.msra.mxu0 %v2438
      %2526 = vmatpush.bf16.msra.mxu0 %v2436
      %2527 = vmatpush.bf16.msra.mxu0 %v2434
      %2528 = vmatpush.bf16.msra.mxu0 %v2432
      %2529 = vmatmul.bf16.gmra.mxu0 %v2295
      %v2530 = vpop.f32.mrf.mxu0
      %v2531 = vadd.f32 %v2332, %v2530
      %v2532 = vpop.f32.mrf.mxu0
      %2533 = vdwg.mxu0
      %2534 = vmatpush.bf16.msra.mxu0 %v2462
      %2535 = vmatpush.bf16.msra.mxu0 %v2460
      %2536 = vmatpush.bf16.msra.mxu0 %v2458
      %2537 = vmatpush.bf16.msra.mxu0 %v2456
      %2538 = vmatpush.bf16.msra.mxu0 %v2454
      %2539 = vmatpush.bf16.msra.mxu0 %v2452
      %2540 = vmatpush.bf16.msra.mxu0 %v2450
      %2541 = vmatpush.bf16.msra.mxu0 %v2448
      %2542 = vmatmul.bf16.gmra.mxu0 %v2296
      %v2543 = vpop.f32.mrf.mxu0
      %v2544 = vadd.f32 %v2531, %v2543
      %v2545 = vpop.f32.mrf.mxu0
      %2546 = vdwg.mxu0
      %v2547 = vmax.f32 %v2518, 0.0
      %v2548 = vmax.f32 %v2544, 0.0
      %v2549 = vpack.c.bf16 %v2547, %v2547
      %v2550 = vpack.c.bf16 %v2548, %v2548
      %v2551 = vld [vmem:[%s651] sm:$0xff]
      %v2552 = vld [vmem:[%s651 + $0x8] sm:$0xff]
      %v2553 = vld [vmem:[%s651 + $0x10] sm:$0xff]
      %v2554 = vld [vmem:[%s651 + $0x18] sm:$0xff]
      %v2555 = vld [vmem:[%s651 + $0x20] sm:$0xff]
      %v2556 = vld [vmem:[%s651 + $0x28] sm:$0xff]
      %v2557 = vld [vmem:[%s651 + $0x30] sm:$0xff]
      %v2558 = vld [vmem:[%s651 + $0x38] sm:$0xff]
      %v2559 = vld [vmem:[%s651 + $0x40] sm:$0xff]
      %v2560 = vld [vmem:[%s651 + $0x48] sm:$0xff]
      %v2561 = vld [vmem:[%s651 + $0x50] sm:$0xff]
      %v2562 = vld [vmem:[%s651 + $0x58] sm:$0xff]
      %v2563 = vld [vmem:[%s651 + $0x60] sm:$0xff]
      %v2564 = vld [vmem:[%s651 + $0x68] sm:$0xff]
      %v2565 = vld [vmem:[%s651 + $0x70] sm:$0xff]
      %v2566 = vld [vmem:[%s651 + $0x78] sm:$0xff]
      %v2567 = vld [vmem:[%s651 + $0x80] sm:$0xff]
      %v2568 = vld [vmem:[%s651 + $0x88] sm:$0xff]
      %v2569 = vld [vmem:[%s651 + $0x90] sm:$0xff]
      %v2570 = vld [vmem:[%s651 + $0x98] sm:$0xff]
      %v2571 = vld [vmem:[%s651 + $0xa0] sm:$0xff]
      %v2572 = vld [vmem:[%s651 + $0xa8] sm:$0xff]
      %v2573 = vld [vmem:[%s651 + $0xb0] sm:$0xff]
      %v2574 = vld [vmem:[%s651 + $0xb8] sm:$0xff]
      %v2575 = vld [vmem:[%s651 + $0xc0] sm:$0xff]
      %v2576 = vld [vmem:[%s651 + $0xc8] sm:$0xff]
      %v2577 = vld [vmem:[%s651 + $0xd0] sm:$0xff]
      %v2578 = vld [vmem:[%s651 + $0xd8] sm:$0xff]
      %v2579 = vld [vmem:[%s651 + $0xe0] sm:$0xff]
      %v2580 = vld [vmem:[%s651 + $0xe8] sm:$0xff]
      %v2581 = vld [vmem:[%s651 + $0xf0] sm:$0xff]
      %v2582 = vld [vmem:[%s651 + $0xf8] sm:$0xff]
      %v2583 = vld [vmem:[%s655] sm:$0x3]
      %v2585 = vperm.slane %v2583, 0
      %v2586 = vperm.slane %v2583, 1
      %v2621 = vunpack.c.l.b16 %v2551
      %v2622 = vunpack.c.h.b16 %v2551
      %v2623 = vunpack.c.l.b16 %v2552
      %v2624 = vunpack.c.h.b16 %v2552
      %v2625 = vunpack.c.l.b16 %v2553
      %v2626 = vunpack.c.h.b16 %v2553
      %v2627 = vunpack.c.l.b16 %v2554
      %v2628 = vunpack.c.h.b16 %v2554
      %v2629 = vunpack.c.l.b16 %v2555
      %v2630 = vunpack.c.h.b16 %v2555
      %v2631 = vunpack.c.l.b16 %v2556
      %v2632 = vunpack.c.h.b16 %v2556
      %v2633 = vunpack.c.l.b16 %v2557
      %v2634 = vunpack.c.h.b16 %v2557
      %v2635 = vunpack.c.l.b16 %v2558
      %v2636 = vunpack.c.h.b16 %v2558
      %v2637 = vunpack.c.l.b16 %v2559
      %v2638 = vunpack.c.h.b16 %v2559
      %v2639 = vunpack.c.l.b16 %v2560
      %v2640 = vunpack.c.h.b16 %v2560
      %v2641 = vunpack.c.l.b16 %v2561
      %v2642 = vunpack.c.h.b16 %v2561
      %v2643 = vunpack.c.l.b16 %v2562
      %v2644 = vunpack.c.h.b16 %v2562
      %v2645 = vunpack.c.l.b16 %v2563
      %v2646 = vunpack.c.h.b16 %v2563
      %v2647 = vunpack.c.l.b16 %v2564
      %v2648 = vunpack.c.h.b16 %v2564
      %v2649 = vunpack.c.l.b16 %v2565
      %v2650 = vunpack.c.h.b16 %v2565
      %v2651 = vunpack.c.l.b16 %v2566
      %v2652 = vunpack.c.h.b16 %v2566
      %v2653 = vunpack.c.l.b16 %v2567
      %v2654 = vunpack.c.h.b16 %v2567
      %v2655 = vunpack.c.l.b16 %v2568
      %v2656 = vunpack.c.h.b16 %v2568
      %v2657 = vunpack.c.l.b16 %v2569
      %v2658 = vunpack.c.h.b16 %v2569
      %v2659 = vunpack.c.l.b16 %v2570
      %v2660 = vunpack.c.h.b16 %v2570
      %v2661 = vunpack.c.l.b16 %v2571
      %v2662 = vunpack.c.h.b16 %v2571
      %v2663 = vunpack.c.l.b16 %v2572
      %v2664 = vunpack.c.h.b16 %v2572
      %v2665 = vunpack.c.l.b16 %v2573
      %v2666 = vunpack.c.h.b16 %v2573
      %v2667 = vunpack.c.l.b16 %v2574
      %v2668 = vunpack.c.h.b16 %v2574
      %v2669 = vunpack.c.l.b16 %v2575
      %v2670 = vunpack.c.h.b16 %v2575
      %v2671 = vunpack.c.l.b16 %v2576
      %v2672 = vunpack.c.h.b16 %v2576
      %v2673 = vunpack.c.l.b16 %v2577
      %v2674 = vunpack.c.h.b16 %v2577
      %v2675 = vunpack.c.l.b16 %v2578
      %v2676 = vunpack.c.h.b16 %v2578
      %v2677 = vunpack.c.l.b16 %v2579
      %v2678 = vunpack.c.h.b16 %v2579
      %v2679 = vunpack.c.l.b16 %v2580
      %v2680 = vunpack.c.h.b16 %v2580
      %v2681 = vunpack.c.l.b16 %v2581
      %v2682 = vunpack.c.h.b16 %v2581
      %v2683 = vunpack.c.l.b16 %v2582
      %v2684 = vunpack.c.h.b16 %v2582
      %v2685 = vpack.c.b16 %v2623, %v2621
      %v2686 = vpack.c.b16 %v2624, %v2622
      %v2687 = vpack.c.b16 %v2627, %v2625
      %v2688 = vpack.c.b16 %v2628, %v2626
      %v2689 = vpack.c.b16 %v2631, %v2629
      %v2690 = vpack.c.b16 %v2632, %v2630
      %v2691 = vpack.c.b16 %v2635, %v2633
      %v2692 = vpack.c.b16 %v2636, %v2634
      %v2693 = vpack.c.b16 %v2639, %v2637
      %v2694 = vpack.c.b16 %v2640, %v2638
      %v2695 = vpack.c.b16 %v2643, %v2641
      %v2696 = vpack.c.b16 %v2644, %v2642
      %v2697 = vpack.c.b16 %v2647, %v2645
      %v2698 = vpack.c.b16 %v2648, %v2646
      %v2699 = vpack.c.b16 %v2651, %v2649
      %v2700 = vpack.c.b16 %v2652, %v2650
      %v2701 = vpack.c.b16 %v2655, %v2653
      %v2702 = vpack.c.b16 %v2656, %v2654
      %v2703 = vpack.c.b16 %v2659, %v2657
      %v2704 = vpack.c.b16 %v2660, %v2658
      %v2705 = vpack.c.b16 %v2663, %v2661
      %v2706 = vpack.c.b16 %v2664, %v2662
      %v2707 = vpack.c.b16 %v2667, %v2665
      %v2708 = vpack.c.b16 %v2668, %v2666
      %v2709 = vpack.c.b16 %v2671, %v2669
      %v2710 = vpack.c.b16 %v2672, %v2670
      %v2711 = vpack.c.b16 %v2675, %v2673
      %v2712 = vpack.c.b16 %v2676, %v2674
      %v2713 = vpack.c.b16 %v2679, %v2677
      %v2714 = vpack.c.b16 %v2680, %v2678
      %v2715 = vpack.c.b16 %v2683, %v2681
      %v2716 = vpack.c.b16 %v2684, %v2682
      %2749 = vmatpush.bf16.msra.mxu0 %v2699
      %2750 = vmatpush.bf16.msra.mxu0 %v2697
      %2751 = vmatpush.bf16.msra.mxu0 %v2695
      %2752 = vmatpush.bf16.msra.mxu0 %v2693
      %2753 = vmatpush.bf16.msra.mxu0 %v2691
      %2754 = vmatpush.bf16.msra.mxu0 %v2689
      %2755 = vmatpush.bf16.msra.mxu0 %v2687
      %2756 = vmatpush.bf16.msra.mxu0 %v2685
      %2757 = vmatmul.bf16.gmra.mxu0 %v2549
      %v2758 = vpop.f32.mrf.mxu0
      %v2759 = vadd.f32 %v2585, %v2758
      %v2760 = vpop.f32.mrf.mxu0
      %2761 = vdwg.mxu0
      %2762 = vmatpush.bf16.msra.mxu0 %v2715
      %2763 = vmatpush.bf16.msra.mxu0 %v2713
      %2764 = vmatpush.bf16.msra.mxu0 %v2711
      %2765 = vmatpush.bf16.msra.mxu0 %v2709
      %2766 = vmatpush.bf16.msra.mxu0 %v2707
      %2767 = vmatpush.bf16.msra.mxu0 %v2705
      %2768 = vmatpush.bf16.msra.mxu0 %v2703
      %2769 = vmatpush.bf16.msra.mxu0 %v2701
      %2770 = vmatmul.bf16.gmra.mxu0 %v2550
      %v2771 = vpop.f32.mrf.mxu0
      %v2772 = vadd.f32 %v2759, %v2771
      %v2773 = vpop.f32.mrf.mxu0
      %2774 = vdwg.mxu0
      %2775 = vmatpush.bf16.msra.mxu0 %v2700
      %2776 = vmatpush.bf16.msra.mxu0 %v2698
      %2777 = vmatpush.bf16.msra.mxu0 %v2696
      %2778 = vmatpush.bf16.msra.mxu0 %v2694
      %2779 = vmatpush.bf16.msra.mxu0 %v2692
      %2780 = vmatpush.bf16.msra.mxu0 %v2690
      %2781 = vmatpush.bf16.msra.mxu0 %v2688
      %2782 = vmatpush.bf16.msra.mxu0 %v2686
      %2783 = vmatmul.bf16.gmra.mxu0 %v2549
      %v2784 = vpop.f32.mrf.mxu0
      %v2785 = vadd.f32 %v2586, %v2784
      %v2786 = vpop.f32.mrf.mxu0
      %2787 = vdwg.mxu0
      %2788 = vmatpush.bf16.msra.mxu0 %v2716
      %2789 = vmatpush.bf16.msra.mxu0 %v2714
      %2790 = vmatpush.bf16.msra.mxu0 %v2712
      %2791 = vmatpush.bf16.msra.mxu0 %v2710
      %2792 = vmatpush.bf16.msra.mxu0 %v2708
      %2793 = vmatpush.bf16.msra.mxu0 %v2706
      %2794 = vmatpush.bf16.msra.mxu0 %v2704
      %2795 = vmatpush.bf16.msra.mxu0 %v2702
      %2796 = vmatmul.bf16.gmra.mxu0 %v2550
      %v2797 = vpop.f32.mrf.mxu0
      %v2798 = vadd.f32 %v2785, %v2797
      %v2799 = vpop.f32.mrf.mxu0
      %2800 = vdwg.mxu0
      %v2801 = vadd.f32 %v2293, %v2772
      %v2802 = vadd.f32 %v2294, %v2798
      %v2803 = vadd.f32 %v2801, %v2802
      %2804 = vadd.xlane.f32.xlu0 %v2803
      %v2805 = vpop.xlane.xlu0 %2804
      %v2806 = vmul.f32 %v2805, %v2256
      %v2807 = vsub.f32 %v2801, %v2806
      %v2808 = vsub.f32 %v2802, %v2806
      %v2809 = vmul.f32 %v2807, %v2807
      %v2810 = vmul.f32 %v2808, %v2808
      %v2811 = vadd.f32 %v2809, %v2810
      %2812 = vadd.xlane.f32.xlu0 %v2811
      %v2813 = vpop.xlane.xlu0 %2812
      %v2814 = vmul.f32 %v2813, %v2256
      %v2815 = vadd.f32 %v2814, 1e-05
      %v2816 = vrsqrt.pop %v2815
      %v2817 = vmul.f32 %v2816, %v2815
      %v2818 = vmul.f32 %v2817, %v2816
      %v2819 = vmul.f32 0.5, %v2818
      %v2820 = vsub.f32 1.5, %v2819
      %v2821 = vmul.f32 %v2816, %v2820
      %vm2822 = vweird.f32 %v2815
      %vm2823 = vweird.f32 %v2816
      %vm2824 = vmor %vm2822, %vm2823
      %v2825 = vsel %vm2824, %v2816, %v2821
      %v2826 = vmul.f32 %v2807, %v2825
      %v2827 = vmul.f32 %v2808, %v2825
      %v2828 = vld [vmem:[%s659] sm:$0x3]
      %v2830 = vperm.slane %v2828, 0
      %v2831 = vperm.slane %v2828, 1
      %v2834 = vmul.f32 %v2826, %v2830
      %v2835 = vmul.f32 %v2827, %v2831
      %v2836 = vld [vmem:[%s663] sm:$0x3]
      %v2838 = vperm.slane %v2836, 0
      %v2839 = vperm.slane %v2836, 1
      %v2842 = vadd.f32 %v2834, %v2838
      %v2843 = vadd.f32 %v2835, %v2839
      %2844 = vst [vmem:[%s668] sm:$0xff] %v2842
      %2845 = vst [vmem:[%s668 + $0x8] sm:$0xff] %v2843
      %p2846 = scmp.lt.s32.totalorder %s28, 1
      %s2847 = scalar_select %p2846, %s28, 1
      %s2848 = smul.addr %s2847, 2
      %s2849 = smul.addr %s2848, 8
      %s2850 = scalar_lea.vmem %s13, %s2849
      // Predicated region
      $region77: #{_encoder_forward_impl.1} parent=71 // pred_check
        %p2851 = pneg %p392
      $region78: #{_encoder_forward_impl.1} parent=71 // pred_check_branch
        %2853 = sbr.rel (%p2851) target = $region80
      $region79: #{_encoder_forward_impl.1} parent=71 // pred_region
        _
      $region80: #{_encoder_forward_impl.1} parent=71 // pred_fallthru
        _
    $region72: #{_encoder_forward_impl.1} parent=5 // pred_fallthru
      _
    %p2854 = scmp.le.s32.totalorder 2, %s19
    // Predicated region
    $region81: #{_encoder_forward_impl.1} parent=5 // pred_check
      %p2855 = pneg %p2854
    $region82: #{_encoder_forward_impl.1} parent=5 // pred_check_branch
      %2857 = sbr.rel (%p2855) target = $region84
    $region83: #{_encoder_forward_impl.1} parent=5 // pred_region
      %s2858 = ssub.s32 %s19, 2
      // Predicated region
      $region85: #{_encoder_forward_impl.1} parent=83 // pred_check
        %p2859 = pneg %p398
      $region86: #{_encoder_forward_impl.1} parent=83 // pred_check_branch
        %2861 = sbr.rel (%p2859) target = $region88
      $region87: #{_encoder_forward_impl.1} parent=83 // pred_region
        %p2862 = scmp.lt.s32.totalorder %s30, 1
        %s2863 = scalar_select %p2862, %s30, 1
        %s2864 = smul.addr %s2863, 2
        %s2865 = smul.addr %s2864, 8
        %s2866 = scalar_lea.vmem %s13, %s2865
      $region88: #{_encoder_forward_impl.1} parent=83 // pred_fallthru
        _
    $region84: #{_encoder_forward_impl.1} parent=5 // pred_fallthru
      _
  $region6: #{_encoder_forward_impl.1} parent=0 // loop_footer
    %s23 = sadd.s32 1, %s19
  $region7: #{_encoder_forward_impl.1} parent=0 // loop_footer_branch
    %18 = sbr.rel target = $region3
  $region8: #{_encoder_forward_impl.1} parent=0 // loop_exit
    _

</llo_original>
